<compile_context>
chip_gen: v5e
topology: v5e:2x2
jax: 0.10.0
libtpu: 0.0.40
codegen_flags: <defaults>
</compile_context>

<pallas_src>
import jax
import jax.numpy as jnp
from jax import lax
from jax.experimental import pallas as pl
from jax.experimental.pallas import tpu as pltpu

EPS = 1e-5                      # nn.LayerNorm default eps
MATMUL_DTYPE = jnp.bfloat16     # MXU operand dtype (accumulation is always f32)


def _layernorm(x, gamma, beta):
    # Two-pass (centered) variance: robust when |mean| >> std.
    mu = jnp.mean(x, axis=-1, keepdims=True)
    d = x - mu
    var = jnp.mean(d * d, axis=-1, keepdims=True)
    return d * lax.rsqrt(var + EPS) * gamma + beta


def _gelu_exact(x):
    # nn.GELU() default = exact erf formulation (kept in f32).
    return 0.5 * x * (1.0 + lax.erf(x * jnp.float32(0.7071067811865476)))


def _mm(a, b, dims):
    # MXU matmul: bf16 (or f32) operands, f32 accumulation.
    return lax.dot_general(a.astype(MATMUL_DTYPE), b.astype(MATMUL_DTYPE), dims,
                           preferred_element_type=jnp.float32)


def mixer_kernel(x_ref,
                 g1_ref, be1_ref,            # LN before token mixing
                 w1t_ref, b1t_ref,           # Linear(P  -> Th), weight stored (in, out)
                 w2t_ref, b2t_ref,           # Linear(Th -> P),  bias stored (P, 1)
                 g2_ref, be2_ref,            # LN before channel mixing
                 w1c_ref, b1c_ref,           # Linear(C  -> Ch), block (C, TCH)
                 w2c_ref, b2c_ref,           # Linear(Ch -> C),  block (TCH, C)
                 o_ref,
                 z_ref, acc_ref):            # scratch: LN2(x1) (P,C); f32 accumulator (P,C)
    k = pl.program_id(2)

    # ---- token mixing + residual + LN2: once per (stream, sample) ----
    @pl.when(k == 0)
    def _():
        x = x_ref[0, 0].astype(jnp.float32)                              # (P, C)
        y = _layernorm(x, g1_ref[0], be1_ref[0])                         # (P, C)
        # h[c, t] = sum_p y[p, c] * w1t[p, t]   ('b p c -> b c p' folded in)
        h = _gelu_exact(_mm(y, w1t_ref[0], (((0,), (0,)), ((), ())))
                        + b1t_ref[0])                                    # (C, Th)
        # tok[p, c] = sum_t w2t[t, p] * h[c, t] ('b c p -> b p c' folded in)
        tok = _mm(w2t_ref[0], h, (((0,), (1,)), ((), ()))) + b2t_ref[0]  # (P, C)
        x1 = x + tok                                                     # token residual
        z_ref[...] = _layernorm(x1, g2_ref[0], be2_ref[0]).astype(z_ref.dtype)
        acc_ref[...] = x1 + b2c_ref[0]        # channel residual + final bias, f32

    # ---- channel MLP: Ch tiled along the (arbitrary) reduction axis ----
    h2 = _gelu_exact(_mm(z_ref[...], w1c_ref[0], (((1,), (0,)), ((), ())))
                     + b1c_ref[0])                                       # (P, TCH)
    acc_ref[...] += _mm(h2, w2c_ref[0], (((1,), (0,)), ((), ())))        # (P, C)

    @pl.when(k == pl.num_programs(2) - 1)
    def _():
        o_ref[0, 0] = acc_ref[...].astype(o_ref.dtype)


def _pick_ch_tile(ch, max_tile=512):
    """Largest Ch tile <= max_tile that is a multiple of 128 and divides Ch."""
    if ch <= max_tile or ch % 128 != 0:
        return ch
    for t in range(max_tile, 127, -128):
        if ch % t == 0:
            return t
    return ch


def stack_mixer_params(params_img, params_sv):
    """Stack per-stream params ONCE (outside the forward path).  Big matmul
    weights are stored as MATMUL_DTYPE (bf16) to halve HBM/VMEM traffic."""
    mat_keys = {"w1t", "w2t", "w1c", "w2c"}
    out = {}
    for k in params_img:
        v = jnp.stack([params_img[k], params_sv[k]], axis=0)
        out[k] = v.astype(MATMUL_DTYPE) if k in mat_keys else v
    return out


@jax.jit
def mixer_block(img, sv, p):
    """MixerBlock.forward: returns (x_img, x_sv)."""
    x = jnp.stack([img, sv], axis=0)                                     # (S, B, P, C)
    S, B, P, C = x.shape
    Th = p["w1t"].shape[-1]
    Ch = p["w1c"].shape[-1]
    TCH = _pick_ch_tile(Ch)
    KCH = Ch // TCH

    def const(d0, d1):   # per-stream parameter, invariant over (b, k) -> DMA'd once
        return pl.BlockSpec((1, d0, d1), lambda s, b, k: (s, 0, 0))

    in_specs = [
        pl.BlockSpec((1, 1, P, C), lambda s, b, k: (s, b, 0, 0)),        # x
        const(1, C), const(1, C),                                        # LN1 gamma/beta
        const(P, Th), const(1, Th),                                      # token MLP W1, b1
        const(Th, P), const(P, 1),                                       # token MLP W2, b2
        const(1, C), const(1, C),                                        # LN2 gamma/beta
        pl.BlockSpec((1, C, TCH), lambda s, b, k: (s, 0, k)),            # channel MLP W1
        pl.BlockSpec((1, 1, TCH), lambda s, b, k: (s, 0, k)),            # channel MLP b1
        pl.BlockSpec((1, TCH, C), lambda s, b, k: (s, k, 0)),            # channel MLP W2
        const(1, C),                                                     # channel MLP b2
    ]

    out = pl.pallas_call(
        mixer_kernel,
        out_shape=jax.ShapeDtypeStruct((S, B, P, C), x.dtype),
        grid=(S, B, KCH),
        in_specs=in_specs,
        out_specs=pl.BlockSpec((1, 1, P, C), lambda s, b, k: (s, b, 0, 0)),
        scratch_shapes=[pltpu.VMEM((P, C), MATMUL_DTYPE),   # LN2(x1), fed to the MXU
                        pltpu.VMEM((P, C), jnp.float32)],   # f32 residual/accumulator
        compiler_params=pltpu.CompilerParams(
            dimension_semantics=("parallel", "parallel", "arbitrary"),
            vmem_limit_bytes=48 * 1024 * 1024,  # headroom under v7x's 64 MiB physical
        ),
    )(x,
      p["ln1_g"], p["ln1_b"],
      p["w1t"], p["b1t"], p["w2t"], p["b2t"],
      p["ln2_g"], p["ln2_b"],
      p["w1c"], p["b1c"], p["w2c"], p["b2c"])

    return out[0], out[1]


# ---------------- pure-JAX reference (exact f32, for correctness check) ----------------
def _ref_stream(x, p):
    x = x.astype(jnp.float32)

    def ln(v, g, b):
        mu = jnp.mean(v, axis=-1, keepdims=True)
        var = jnp.mean((v - mu) ** 2, axis=-1, keepdims=True)
        return (v - mu) / jnp.sqrt(var + EPS) * g + b

    gelu = lambda v: 0.5 * v * (1.0 + lax.erf(v / jnp.sqrt(2.0)))

    y = ln(x, p["ln1_g"][0], p["ln1_b"][0])                   # (B, P, C)
    yt = jnp.swapaxes(y, 1, 2)                                # (B, C, P)
    h = gelu(yt @ p["w1t"] + p["b1t"][0])                     # (B, C, Th)
    tok = h @ p["w2t"] + p["b2t"][:, 0]                       # (B, C, P)
    x1 = x + jnp.swapaxes(tok, 1, 2)

    z = ln(x1, p["ln2_g"][0], p["ln2_b"][0])
    h2 = gelu(z @ p["w1c"] + p["b1c"][0])
    ch = h2 @ p["w2c"] + p["b2c"][0]
    return x1 + ch


# ---------------- deterministic parameter init ----------------
def init_stream_params(key, num_patches, num_channels, tokens_hidden, channels_hidden):
    ks = jax.random.split(key, 8)
    f32 = jnp.float32
    # Weights stored already transposed (in_dim, out_dim) relative to torch's (out, in).
    return {
        "ln1_g": jnp.ones((1, num_channels), f32),
        "ln1_b": jnp.zeros((1, num_channels), f32),
        "w1t": jax.random.normal(ks[0], (num_patches, tokens_hidden), f32) * 0.05,
        "b1t": jax.random.normal(ks[1], (1, tokens_hidden), f32) * 0.05,
        "w2t": jax.random.normal(ks[2], (tokens_hidden, num_patches), f32) * 0.05,
        "b2t": jax.random.normal(ks[3], (num_patches, 1), f32) * 0.05,   # column vector
        "ln2_g": jnp.ones((1, num_channels), f32),
        "ln2_b": jnp.zeros((1, num_channels), f32),
        "w1c": jax.random.normal(ks[4], (num_channels, channels_hidden), f32) * 0.05,
        "b1c": jax.random.normal(ks[5], (1, channels_hidden), f32) * 0.05,
        "w2c": jax.random.normal(ks[6], (channels_hidden, num_channels), f32) * 0.05,
        "b2c": jax.random.normal(ks[7], (1, num_channels), f32) * 0.05,
    }


if __name__ == "__main__":
    B, P, C = 2, 16, 16           # batch, num_patches, num_channels
    Th, Ch = 32, 32               # tokens_hidden_dim, channels_hidden_dim

    key = jax.random.PRNGKey(0)
    k_img, k_sv, k_pi, k_ps = jax.random.split(key, 4)

    img = jax.random.normal(k_img, (B, P, C), jnp.float32)
    sv = jax.random.normal(k_sv, (B, P, C), jnp.float32)

    params_img = init_stream_params(k_pi, P, C, Th, Ch)
    params_sv = init_stream_params(k_ps, P, C, Th, Ch)

    # Parameters are stacked / cast to bf16 ONCE, outside the forward path.
    stacked = stack_mixer_params(params_img, params_sv)

    out_img, out_sv = mixer_block(img, sv, stacked)
    out_img = jax.block_until_ready(out_img)
    out_sv = jax.block_until_ready(out_sv)

    ref_img = _ref_stream(img, params_img)
    ref_sv = _ref_stream(sv, params_sv)

    # bf16 MXU operands => loosened tolerances vs the exact f32 reference.
    assert jnp.allclose(out_img, ref_img, atol=3e-2, rtol=3e-2), "img mismatch"
    assert jnp.allclose(out_sv, ref_sv, atol=3e-2, rtol=3e-2), "sv mismatch"
    print("KERNEL_OK")
</pallas_src>

<mosaic_0001>
module attributes {stable_mosaic.version = 11 : i64} {
  func.func @mixer_kernel(%arg0: i32, %arg1: i32, %arg2: i32, %arg3: memref<1x1x16x16xf32, #tpu.memory_space<vmem>>, %arg4: memref<1x1x16xf32, #tpu.memory_space<vmem>>, %arg5: memref<1x1x16xf32, #tpu.memory_space<vmem>>, %arg6: memref<1x16x32xbf16, #tpu.memory_space<vmem>>, %arg7: memref<1x1x32xf32, #tpu.memory_space<vmem>>, %arg8: memref<1x32x16xbf16, #tpu.memory_space<vmem>>, %arg9: memref<1x16x1xf32, #tpu.memory_space<vmem>>, %arg10: memref<1x1x16xf32, #tpu.memory_space<vmem>>, %arg11: memref<1x1x16xf32, #tpu.memory_space<vmem>>, %arg12: memref<1x16x32xbf16, #tpu.memory_space<vmem>>, %arg13: memref<1x1x32xf32, #tpu.memory_space<vmem>>, %arg14: memref<1x32x16xbf16, #tpu.memory_space<vmem>>, %arg15: memref<1x1x16xf32, #tpu.memory_space<vmem>>, %arg16: memref<1x1x16x16xf32, #tpu.memory_space<vmem>>, %arg17: memref<16x16xbf16, #tpu.memory_space<vmem>>, %arg18: memref<16x16xf32, #tpu.memory_space<vmem>>) attributes {dimension_semantics = [#tpu.dimension_semantics<parallel>, #tpu.dimension_semantics<parallel>, #tpu.dimension_semantics<arbitrary>], iteration_bounds = array<i64: 2, 2, 1>, scalar_prefetch = 0 : i64, scratch_operands = 2 : i64, tpu.core_type = #tpu.core_type<tc>, window_params = [{transform_indices = @transform_0, window_bounds = array<i64: 1, 1, 16, 16>}, {transform_indices = @transform_1, window_bounds = array<i64: 1, 1, 16>}, {transform_indices = @transform_2, window_bounds = array<i64: 1, 1, 16>}, {transform_indices = @transform_3, window_bounds = array<i64: 1, 16, 32>}, {transform_indices = @transform_4, window_bounds = array<i64: 1, 1, 32>}, {transform_indices = @transform_5, window_bounds = array<i64: 1, 32, 16>}, {transform_indices = @transform_6, window_bounds = array<i64: 1, 16, 1>}, {transform_indices = @transform_7, window_bounds = array<i64: 1, 1, 16>}, {transform_indices = @transform_8, window_bounds = array<i64: 1, 1, 16>}, {transform_indices = @transform_9, window_bounds = array<i64: 1, 16, 32>}, {transform_indices = @transform_10, window_bounds = array<i64: 1, 1, 32>}, {transform_indices = @transform_11, window_bounds = array<i64: 1, 32, 16>}, {transform_indices = @transform_12, window_bounds = array<i64: 1, 1, 16>}, {transform_indices = @transform_13, window_bounds = array<i64: 1, 1, 16, 16>}]} {
    %c0_i32 = arith.constant 0 : i32
    %0 = arith.cmpi eq, %arg2, %c0_i32 : i32
    %1 = arith.extui %0 : i1 to i32
    %c0_i32_0 = arith.constant 0 : i32
    %2 = arith.cmpi ne, %1, %c0_i32_0 : i32
    scf.if %2 {
      %c0_21 = arith.constant 0 : index
      %c0_22 = arith.constant 0 : index
      %c0_23 = arith.constant 0 : index
      %c0_24 = arith.constant 0 : index
      %29 = vector.load %arg3[%c0_21, %c0_22, %c0_23, %c0_24] : memref<1x1x16x16xf32, #tpu.memory_space<vmem>>, vector<1x1x16x16xf32>
      %30 = vector.shape_cast %29 : vector<1x1x16x16xf32> to vector<16x16xf32>
      %c0_25 = arith.constant 0 : index
      %c0_26 = arith.constant 0 : index
      %c0_27 = arith.constant 0 : index
      %31 = vector.load %arg4[%c0_25, %c0_26, %c0_27] : memref<1x1x16xf32, #tpu.memory_space<vmem>>, vector<1x1x16xf32>
      %32 = vector.shape_cast %31 : vector<1x1x16xf32> to vector<1x16xf32>
      %c0_28 = arith.constant 0 : index
      %c0_29 = arith.constant 0 : index
      %c0_30 = arith.constant 0 : index
      %33 = vector.load %arg5[%c0_28, %c0_29, %c0_30] : memref<1x1x16xf32, #tpu.memory_space<vmem>>, vector<1x1x16xf32>
      %34 = vector.shape_cast %33 : vector<1x1x16xf32> to vector<1x16xf32>
      %cst_31 = arith.constant dense<0.000000e+00> : vector<16xf32>
      %35 = vector.multi_reduction <add>, %30, %cst_31 [1] : vector<16x16xf32> to vector<16xf32>
      %36 = vector.shape_cast %35 : vector<16xf32> to vector<16x1xf32>
      %cst_32 = arith.constant 1.600000e+01 : f32
      %37 = vector.broadcast %cst_32 : f32 to vector<16x1xf32>
      %38 = arith.divf %36, %37 : vector<16x1xf32>
      %39 = vector.broadcast %38 : vector<16x1xf32> to vector<16x16xf32>
      %40 = arith.subf %30, %39 : vector<16x16xf32>
      %41 = arith.mulf %40, %40 : vector<16x16xf32>
      %cst_33 = arith.constant dense<0.000000e+00> : vector<16xf32>
      %42 = vector.multi_reduction <add>, %41, %cst_33 [1] : vector<16x16xf32> to vector<16xf32>
      %43 = vector.shape_cast %42 : vector<16xf32> to vector<16x1xf32>
      %cst_34 = arith.constant 1.600000e+01 : f32
      %44 = vector.broadcast %cst_34 : f32 to vector<16x1xf32>
      %45 = arith.divf %43, %44 : vector<16x1xf32>
      %cst_35 = arith.constant 9.99999974E-6 : f32
      %46 = vector.broadcast %cst_35 : f32 to vector<16x1xf32>
      %47 = arith.addf %45, %46 : vector<16x1xf32>
      %48 = math.rsqrt %47 : vector<16x1xf32>
      %49 = vector.broadcast %48 : vector<16x1xf32> to vector<16x16xf32>
      %50 = arith.mulf %40, %49 : vector<16x16xf32>
      %51 = vector.broadcast %32 : vector<1x16xf32> to vector<16x16xf32>
      %52 = arith.mulf %50, %51 : vector<16x16xf32>
      %53 = vector.broadcast %34 : vector<1x16xf32> to vector<16x16xf32>
      %54 = arith.addf %52, %53 : vector<16x16xf32>
      %c0_36 = arith.constant 0 : index
      %c0_37 = arith.constant 0 : index
      %c0_38 = arith.constant 0 : index
      %55 = vector.load %arg6[%c0_36, %c0_37, %c0_38] : memref<1x16x32xbf16, #tpu.memory_space<vmem>>, vector<1x16x32xbf16>
      %56 = vector.shape_cast %55 : vector<1x16x32xbf16> to vector<16x32xbf16>
      %57 = arith.truncf %54 : vector<16x16xf32> to vector<16x16xbf16>
      %cst_39 = arith.constant dense<0.000000e+00> : vector<16x32xf32>
      %58 = tpu.matmul %57, %56, %cst_39 {dimension_numbers = #tpu.dot_dimension_numbers<[0], [0], [1], [1], [0, 1, 1, 1], [], []>} : vector<16x16xbf16>, vector<16x32xbf16>, vector<16x32xf32> -> vector<16x32xf32>
      %c0_40 = arith.constant 0 : index
      %c0_41 = arith.constant 0 : index
      %c0_42 = arith.constant 0 : index
      %59 = vector.load %arg7[%c0_40, %c0_41, %c0_42] : memref<1x1x32xf32, #tpu.memory_space<vmem>>, vector<1x1x32xf32>
      %60 = vector.shape_cast %59 : vector<1x1x32xf32> to vector<1x32xf32>
      %61 = vector.broadcast %60 : vector<1x32xf32> to vector<16x32xf32>
      %62 = arith.addf %58, %61 : vector<16x32xf32>
      %cst_43 = arith.constant 5.000000e-01 : f32
      %63 = vector.broadcast %cst_43 : f32 to vector<16x32xf32>
      %64 = arith.mulf %63, %62 : vector<16x32xf32>
      %cst_44 = arith.constant 0.707106769 : f32
      %65 = vector.broadcast %cst_44 : f32 to vector<16x32xf32>
      %66 = arith.mulf %62, %65 : vector<16x32xf32>
      %67 = math.erf %66 : vector<16x32xf32>
      %cst_45 = arith.constant 1.000000e+00 : f32
      %68 = vector.broadcast %cst_45 : f32 to vector<16x32xf32>
      %69 = arith.addf %68, %67 : vector<16x32xf32>
      %70 = arith.mulf %64, %69 : vector<16x32xf32>
      %c0_46 = arith.constant 0 : index
      %c0_47 = arith.constant 0 : index
      %c0_48 = arith.constant 0 : index
      %71 = vector.load %arg8[%c0_46, %c0_47, %c0_48] : memref<1x32x16xbf16, #tpu.memory_space<vmem>>, vector<1x32x16xbf16>
      %72 = vector.shape_cast %71 : vector<1x32x16xbf16> to vector<32x16xbf16>
      %73 = arith.truncf %70 : vector<16x32xf32> to vector<16x32xbf16>
      %cst_49 = arith.constant dense<0.000000e+00> : vector<16x16xf32>
      %74 = tpu.matmul %72, %73, %cst_49 {dimension_numbers = #tpu.dot_dimension_numbers<[0], [1], [1], [0], [0, 1, 1, 0], [], []>} : vector<32x16xbf16>, vector<16x32xbf16>, vector<16x16xf32> -> vector<16x16xf32>
      %c0_50 = arith.constant 0 : index
      %c0_51 = arith.constant 0 : index
      %c0_52 = arith.constant 0 : index
      %75 = vector.load %arg9[%c0_50, %c0_51, %c0_52] : memref<1x16x1xf32, #tpu.memory_space<vmem>>, vector<1x16x1xf32>
      %76 = vector.shape_cast %75 : vector<1x16x1xf32> to vector<16x1xf32>
      %77 = vector.broadcast %76 : vector<16x1xf32> to vector<16x16xf32>
      %78 = arith.addf %74, %77 : vector<16x16xf32>
      %79 = arith.addf %30, %78 : vector<16x16xf32>
      %c0_53 = arith.constant 0 : index
      %c0_54 = arith.constant 0 : index
      %c0_55 = arith.constant 0 : index
      %80 = vector.load %arg10[%c0_53, %c0_54, %c0_55] : memref<1x1x16xf32, #tpu.memory_space<vmem>>, vector<1x1x16xf32>
      %81 = vector.shape_cast %80 : vector<1x1x16xf32> to vector<1x16xf32>
      %c0_56 = arith.constant 0 : index
      %c0_57 = arith.constant 0 : index
      %c0_58 = arith.constant 0 : index
      %82 = vector.load %arg11[%c0_56, %c0_57, %c0_58] : memref<1x1x16xf32, #tpu.memory_space<vmem>>, vector<1x1x16xf32>
      %83 = vector.shape_cast %82 : vector<1x1x16xf32> to vector<1x16xf32>
      %cst_59 = arith.constant dense<0.000000e+00> : vector<16xf32>
      %84 = vector.multi_reduction <add>, %79, %cst_59 [1] : vector<16x16xf32> to vector<16xf32>
      %85 = vector.shape_cast %84 : vector<16xf32> to vector<16x1xf32>
      %cst_60 = arith.constant 1.600000e+01 : f32
      %86 = vector.broadcast %cst_60 : f32 to vector<16x1xf32>
      %87 = arith.divf %85, %86 : vector<16x1xf32>
      %88 = vector.broadcast %87 : vector<16x1xf32> to vector<16x16xf32>
      %89 = arith.subf %79, %88 : vector<16x16xf32>
      %90 = arith.mulf %89, %89 : vector<16x16xf32>
      %cst_61 = arith.constant dense<0.000000e+00> : vector<16xf32>
      %91 = vector.multi_reduction <add>, %90, %cst_61 [1] : vector<16x16xf32> to vector<16xf32>
      %92 = vector.shape_cast %91 : vector<16xf32> to vector<16x1xf32>
      %cst_62 = arith.constant 1.600000e+01 : f32
      %93 = vector.broadcast %cst_62 : f32 to vector<16x1xf32>
      %94 = arith.divf %92, %93 : vector<16x1xf32>
      %cst_63 = arith.constant 9.99999974E-6 : f32
      %95 = vector.broadcast %cst_63 : f32 to vector<16x1xf32>
      %96 = arith.addf %94, %95 : vector<16x1xf32>
      %97 = math.rsqrt %96 : vector<16x1xf32>
      %98 = vector.broadcast %97 : vector<16x1xf32> to vector<16x16xf32>
      %99 = arith.mulf %89, %98 : vector<16x16xf32>
      %100 = vector.broadcast %81 : vector<1x16xf32> to vector<16x16xf32>
      %101 = arith.mulf %99, %100 : vector<16x16xf32>
      %102 = vector.broadcast %83 : vector<1x16xf32> to vector<16x16xf32>
      %103 = arith.addf %101, %102 : vector<16x16xf32>
      %104 = arith.truncf %103 : vector<16x16xf32> to vector<16x16xbf16>
      %c0_64 = arith.constant 0 : index
      %c0_65 = arith.constant 0 : index
      %105 = vector.load %arg17[%c0_64, %c0_65] : memref<16x16xbf16, #tpu.memory_space<vmem>>, vector<16x16xbf16>
      tpu.vector_store %arg17[%c0_64, %c0_65], %104 {strides = array<i32>} : memref<16x16xbf16, #tpu.memory_space<vmem>>, vector<16x16xbf16>,
      %c0_66 = arith.constant 0 : index
      %c0_67 = arith.constant 0 : index
      %c0_68 = arith.constant 0 : index
      %106 = vector.load %arg15[%c0_66, %c0_67, %c0_68] : memref<1x1x16xf32, #tpu.memory_space<vmem>>, vector<1x1x16xf32>
      %107 = vector.shape_cast %106 : vector<1x1x16xf32> to vector<1x16xf32>
      %108 = vector.broadcast %107 : vector<1x16xf32> to vector<16x16xf32>
      %109 = arith.addf %79, %108 : vector<16x16xf32>
      %c0_69 = arith.constant 0 : index
      %c0_70 = arith.constant 0 : index
      %110 = vector.load %arg18[%c0_69, %c0_70] : memref<16x16xf32, #tpu.memory_space<vmem>>, vector<16x16xf32>
      tpu.vector_store %arg18[%c0_69, %c0_70], %109 {strides = array<i32>} : memref<16x16xf32, #tpu.memory_space<vmem>>, vector<16x16xf32>,
    } else {
    }
    %c0 = arith.constant 0 : index
    %c0_1 = arith.constant 0 : index
    %3 = vector.load %arg17[%c0, %c0_1] : memref<16x16xbf16, #tpu.memory_space<vmem>>, vector<16x16xbf16>
    %c0_2 = arith.constant 0 : index
    %c0_3 = arith.constant 0 : index
    %c0_4 = arith.constant 0 : index
    %4 = vector.load %arg12[%c0_2, %c0_3, %c0_4] : memref<1x16x32xbf16, #tpu.memory_space<vmem>>, vector<1x16x32xbf16>
    %5 = vector.shape_cast %4 : vector<1x16x32xbf16> to vector<16x32xbf16>
    %cst = arith.constant dense<0.000000e+00> : vector<16x32xf32>
    %6 = tpu.matmul %3, %5, %cst {dimension_numbers = #tpu.dot_dimension_numbers<[1], [0], [0], [1], [0, 0, 1, 1], [], []>} : vector<16x16xbf16>, vector<16x32xbf16>, vector<16x32xf32> -> vector<16x32xf32>
    %c0_5 = arith.constant 0 : index
    %c0_6 = arith.constant 0 : index
    %c0_7 = arith.constant 0 : index
    %7 = vector.load %arg13[%c0_5, %c0_6, %c0_7] : memref<1x1x32xf32, #tpu.memory_space<vmem>>, vector<1x1x32xf32>
    %8 = vector.shape_cast %7 : vector<1x1x32xf32> to vector<1x32xf32>
    %9 = vector.broadcast %8 : vector<1x32xf32> to vector<16x32xf32>
    %10 = arith.addf %6, %9 : vector<16x32xf32>
    %cst_8 = arith.constant 5.000000e-01 : f32
    %11 = vector.broadcast %cst_8 : f32 to vector<16x32xf32>
    %12 = arith.mulf %11, %10 : vector<16x32xf32>
    %cst_9 = arith.constant 0.707106769 : f32
    %13 = vector.broadcast %cst_9 : f32 to vector<16x32xf32>
    %14 = arith.mulf %10, %13 : vector<16x32xf32>
    %15 = math.erf %14 : vector<16x32xf32>
    %cst_10 = arith.constant 1.000000e+00 : f32
    %16 = vector.broadcast %cst_10 : f32 to vector<16x32xf32>
    %17 = arith.addf %16, %15 : vector<16x32xf32>
    %18 = arith.mulf %12, %17 : vector<16x32xf32>
    %c0_11 = arith.constant 0 : index
    %c0_12 = arith.constant 0 : index
    %19 = vector.load %arg18[%c0_11, %c0_12] : memref<16x16xf32, #tpu.memory_space<vmem>>, vector<16x16xf32>
    %c0_13 = arith.constant 0 : index
    %c0_14 = arith.constant 0 : index
    %c0_15 = arith.constant 0 : index
    %20 = vector.load %arg14[%c0_13, %c0_14, %c0_15] : memref<1x32x16xbf16, #tpu.memory_space<vmem>>, vector<1x32x16xbf16>
    %21 = vector.shape_cast %20 : vector<1x32x16xbf16> to vector<32x16xbf16>
    %22 = arith.truncf %18 : vector<16x32xf32> to vector<16x32xbf16>
    %cst_16 = arith.constant dense<0.000000e+00> : vector<16x16xf32>
    %23 = tpu.matmul %22, %21, %cst_16 {dimension_numbers = #tpu.dot_dimension_numbers<[1], [0], [0], [1], [0, 0, 1, 1], [], []>} : vector<16x32xbf16>, vector<32x16xbf16>, vector<16x16xf32> -> vector<16x16xf32>
    %24 = arith.addf %19, %23 : vector<16x16xf32>
    %c0_17 = arith.constant 0 : index
    %c0_18 = arith.constant 0 : index
    %25 = vector.load %arg18[%c0_17, %c0_18] : memref<16x16xf32, #tpu.memory_space<vmem>>, vector<16x16xf32>
    tpu.vector_store %arg18[%c0_17, %c0_18], %24 {strides = array<i32>} : memref<16x16xf32, #tpu.memory_space<vmem>>, vector<16x16xf32>,
    %c0_i32_19 = arith.constant 0 : i32
    %26 = arith.cmpi eq, %arg2, %c0_i32_19 : i32
    %27 = arith.extui %26 : i1 to i32
    %c0_i32_20 = arith.constant 0 : i32
    %28 = arith.cmpi ne, %27, %c0_i32_20 : i32
    scf.if %28 {
      %c0_21 = arith.constant 0 : index
      %c0_22 = arith.constant 0 : index
      %29 = vector.load %arg18[%c0_21, %c0_22] : memref<16x16xf32, #tpu.memory_space<vmem>>, vector<16x16xf32>
      %c0_23 = arith.constant 0 : index
      %c0_24 = arith.constant 0 : index
      %c0_25 = arith.constant 0 : index
      %c0_26 = arith.constant 0 : index
      %30 = vector.load %arg16[%c0_23, %c0_24, %c0_25, %c0_26] : memref<1x1x16x16xf32, #tpu.memory_space<vmem>>, vector<1x1x16x16xf32>
      %31 = vector.shape_cast %30 : vector<1x1x16x16xf32> to vector<16x16xf32>
      %32 = vector.shape_cast %29 : vector<16x16xf32> to vector<1x1x16x16xf32>
      tpu.vector_store %arg16[%c0_23, %c0_24, %c0_25, %c0_26], %32 {strides = array<i32>} : memref<1x1x16x16xf32, #tpu.memory_space<vmem>>, vector<1x1x16x16xf32>,
    } else {
    }
    return
  }
  func.func @transform_0(%arg0: i32, %arg1: i32, %arg2: i32) -> (i32, i32, i32, i32) {
    %c0_i32 = arith.constant 0 : i32
    %c0_i32_0 = arith.constant 0 : i32
    %c0_i32_1 = arith.constant 0 : i32
    return %arg0, %arg1, %c0_i32, %c0_i32_0 : i32, i32, i32, i32
  }
  func.func @transform_1(%arg0: i32, %arg1: i32, %arg2: i32) -> (i32, i32, i32) {
    %c0_i32 = arith.constant 0 : i32
    %c0_i32_0 = arith.constant 0 : i32
    %c0_i32_1 = arith.constant 0 : i32
    return %arg0, %c0_i32, %c0_i32_0 : i32, i32, i32
  }
  func.func @transform_2(%arg0: i32, %arg1: i32, %arg2: i32) -> (i32, i32, i32) {
    %c0_i32 = arith.constant 0 : i32
    %c0_i32_0 = arith.constant 0 : i32
    %c0_i32_1 = arith.constant 0 : i32
    return %arg0, %c0_i32, %c0_i32_0 : i32, i32, i32
  }
  func.func @transform_3(%arg0: i32, %arg1: i32, %arg2: i32) -> (i32, i32, i32) {
    %c0_i32 = arith.constant 0 : i32
    %c0_i32_0 = arith.constant 0 : i32
    %c0_i32_1 = arith.constant 0 : i32
    return %arg0, %c0_i32, %c0_i32_0 : i32, i32, i32
  }
  func.func @transform_4(%arg0: i32, %arg1: i32, %arg2: i32) -> (i32, i32, i32) {
    %c0_i32 = arith.constant 0 : i32
    %c0_i32_0 = arith.constant 0 : i32
    %c0_i32_1 = arith.constant 0 : i32
    return %arg0, %c0_i32, %c0_i32_0 : i32, i32, i32
  }
  func.func @transform_5(%arg0: i32, %arg1: i32, %arg2: i32) -> (i32, i32, i32) {
    %c0_i32 = arith.constant 0 : i32
    %c0_i32_0 = arith.constant 0 : i32
    %c0_i32_1 = arith.constant 0 : i32
    return %arg0, %c0_i32, %c0_i32_0 : i32, i32, i32
  }
  func.func @transform_6(%arg0: i32, %arg1: i32, %arg2: i32) -> (i32, i32, i32) {
    %c0_i32 = arith.constant 0 : i32
    %c0_i32_0 = arith.constant 0 : i32
    %c0_i32_1 = arith.constant 0 : i32
    return %arg0, %c0_i32, %c0_i32_0 : i32, i32, i32
  }
  func.func @transform_7(%arg0: i32, %arg1: i32, %arg2: i32) -> (i32, i32, i32) {
    %c0_i32 = arith.constant 0 : i32
    %c0_i32_0 = arith.constant 0 : i32
    %c0_i32_1 = arith.constant 0 : i32
    return %arg0, %c0_i32, %c0_i32_0 : i32, i32, i32
  }
  func.func @transform_8(%arg0: i32, %arg1: i32, %arg2: i32) -> (i32, i32, i32) {
    %c0_i32 = arith.constant 0 : i32
    %c0_i32_0 = arith.constant 0 : i32
    %c0_i32_1 = arith.constant 0 : i32
    return %arg0, %c0_i32, %c0_i32_0 : i32, i32, i32
  }
  func.func @transform_9(%arg0: i32, %arg1: i32, %arg2: i32) -> (i32, i32, i32) {
    %c0_i32 = arith.constant 0 : i32
    %c0_i32_0 = arith.constant 0 : i32
    return %arg0, %c0_i32, %arg2 : i32, i32, i32
  }
  func.func @transform_10(%arg0: i32, %arg1: i32, %arg2: i32) -> (i32, i32, i32) {
    %c0_i32 = arith.constant 0 : i32
    %c0_i32_0 = arith.constant 0 : i32
    return %arg0, %c0_i32, %arg2 : i32, i32, i32
  }
  func.func @transform_11(%arg0: i32, %arg1: i32, %arg2: i32) -> (i32, i32, i32) {
    %c0_i32 = arith.constant 0 : i32
    %c0_i32_0 = arith.constant 0 : i32
    return %arg0, %arg2, %c0_i32 : i32, i32, i32
  }
  func.func @transform_12(%arg0: i32, %arg1: i32, %arg2: i32) -> (i32, i32, i32) {
    %c0_i32 = arith.constant 0 : i32
    %c0_i32_0 = arith.constant 0 : i32
    %c0_i32_1 = arith.constant 0 : i32
    return %arg0, %c0_i32, %c0_i32_0 : i32, i32, i32
  }
  func.func @transform_13(%arg0: i32, %arg1: i32, %arg2: i32) -> (i32, i32, i32, i32) {
    %c0_i32 = arith.constant 0 : i32
    %c0_i32_0 = arith.constant 0 : i32
    %c0_i32_1 = arith.constant 0 : i32
    return %arg0, %arg1, %c0_i32, %c0_i32_0 : i32, i32, i32, i32
  }
}

</mosaic_0001>

<llo_original>
// kernel: mixer_block.1
$region0: #{mixer_block.1}
  #allocation0 [shape = 'u32[]', space=smem, size = 0x4, offset = 0x4, fixed_abs, tag = 'smem constant byte address 0x4 - core index']
  #allocation1 [shape = 'u32[72,128]{1,0:T(1,128)}', space=vmem, size = 0x9000, scoped, tag = 'internal scratch']
  #allocation2 [shape = 'bf16[16,16]{1,0:T(8,128)(2,1)}', space=vmem, size = 0x1000, scoped, tag = 'scratch operand']
  #allocation3 [shape = 'f32[16,16]{1,0:T(8,128)}', space=vmem, size = 0x2000, scoped, tag = 'scratch operand']
  %s0 = inlined_call_operand.vmem [shape: f32[2,2,16,16], index: 0, kind: input, shape index: {}]
  %s1 = inlined_call_operand.vmem [shape: f32[2,1,16], index: 1, kind: input, shape index: {}]
  %s2 = inlined_call_operand.vmem [shape: f32[2,1,16], index: 2, kind: input, shape index: {}]
  %s3 = inlined_call_operand.vmem [shape: bf16[2,16,32], index: 3, kind: input, shape index: {}]
  %s4 = inlined_call_operand.vmem [shape: f32[2,1,32], index: 4, kind: input, shape index: {}]
  %s5 = inlined_call_operand.vmem [shape: bf16[2,32,16], index: 5, kind: input, shape index: {}]
  %s6 = inlined_call_operand.vmem [shape: f32[2,16,1], index: 6, kind: input, shape index: {}]
  %s7 = inlined_call_operand.vmem [shape: f32[2,1,16], index: 7, kind: input, shape index: {}]
  %s8 = inlined_call_operand.vmem [shape: f32[2,1,16], index: 8, kind: input, shape index: {}]
  %s9 = inlined_call_operand.vmem [shape: bf16[2,16,32], index: 9, kind: input, shape index: {}]
  %s10 = inlined_call_operand.vmem [shape: f32[2,1,32], index: 10, kind: input, shape index: {}]
  %s11 = inlined_call_operand.vmem [shape: bf16[2,32,16], index: 11, kind: input, shape index: {}]
  %s12 = inlined_call_operand.vmem [shape: f32[2,1,16], index: 12, kind: input, shape index: {}]
  %s13 = inlined_call_operand.vmem [shape: f32[2,2,16,16], index: 13, kind: output, shape index: {}]
  %s14 = sld [smem:[#allocation0]]
  $region93: #{mixer_block.1} parent=0
    _
  %s16 = ssub.s32 1, %s14
  %s17 = scalar_select 0, %s16, %s14
  loop: start=0, step=1, limit=6
  $region2: #{mixer_block.1} parent=0 // loop_pre_header
    _
  $region3: #{mixer_block.1} parent=0 // loop_header
    %s19 = sphi 0, %s23
    %p20 = scmp.ge.s32.totalorder %s19, 6
    %s26 = sphi 0, %s45
    %s27 = sphi 0, %s41
    %s28 = sphi 0, %s37
    %s29 = sphi 0, %s26
    %s30 = sphi 0, %s27
    %s31 = sphi 0, %s28
    %s32 = sphi 0, %s29
    %s33 = sphi 0, %s30
    %s34 = sphi 0, %s31
    %s50 = sphi 0, %s52
    %s53 = sphi 0, %s50
    %s54 = sphi 0, %s53
    %s70 = sphi 0, %s54
    %s76 = sphi 0, %s78
    %s79 = sphi 0, %s76
    %s80 = sphi 0, %s79
    %s96 = sphi 0, %s80
    %s102 = sphi 0, %s104
    %s105 = sphi 0, %s102
    %s106 = sphi 0, %s105
    %s122 = sphi 0, %s106
    %s128 = sphi 0, %s130
    %s131 = sphi 0, %s128
    %s132 = sphi 0, %s131
    %s148 = sphi 0, %s132
    %s154 = sphi 0, %s156
    %s157 = sphi 0, %s154
    %s158 = sphi 0, %s157
    %s174 = sphi 0, %s158
    %s180 = sphi 0, %s182
    %s183 = sphi 0, %s180
    %s184 = sphi 0, %s183
    %s200 = sphi 0, %s184
    %s206 = sphi 0, %s208
    %s209 = sphi 0, %s206
    %s210 = sphi 0, %s209
    %s226 = sphi 0, %s210
    %s232 = sphi 0, %s234
    %s235 = sphi 0, %s232
    %s236 = sphi 0, %s235
    %s252 = sphi 0, %s236
    %s258 = sphi 0, %s260
    %s261 = sphi 0, %s258
    %s262 = sphi 0, %s261
    %s278 = sphi 0, %s262
    %s286 = sphi 0, %s288
    %s289 = sphi 0, %s286
    %s290 = sphi 0, %s289
    %s306 = sphi 0, %s290
    %s314 = sphi 0, %s316
    %s317 = sphi 0, %s314
    %s318 = sphi 0, %s317
    %s334 = sphi 0, %s318
    %s342 = sphi 0, %s344
    %s345 = sphi 0, %s342
    %s346 = sphi 0, %s345
    %s362 = sphi 0, %s346
    %s368 = sphi 0, %s370
    %s371 = sphi 0, %s368
    %s372 = sphi 0, %s371
    %s388 = sphi 0, %s372
    %s396 = sphi 0, %s398
    %s399 = sphi 0, %s396
    %s400 = sphi 0, %s399
    %s416 = sphi 0, %s400
  $region4: #{mixer_block.1} parent=0 // loop_header_branch
    %22 = sbr.rel (%p20) target = $region8
  $region5: #{mixer_block.1} parent=0 // loop_body
    %s24 = ssub.s32 %s19, 1
    %s25 = ssub.s32 %s19, 2
    %s35 = sadd.s32 1, %s28
    %p36 = scmp.ge.s32.totalorder %s35, 1
    %s37 = scalar_select %p36, 0, %s35
    %s38 = sadd.s32 1, %s27
    %s39 = scalar_select %p36, %s38, %s27
    %p40 = scmp.ge.s32.totalorder %s39, 2
    %s41 = scalar_select %p40, 0, %s39
    %s42 = sadd.s32 1, %s26
    %s43 = scalar_select %p40, %s42, %s26
    %p44 = scmp.ge.s32.totalorder %s43, 2
    %s45 = scalar_select %p44, 0, %s43
    %s46 = ssub.s32 %s26, %s45
    %s47 = ssub.s32 %s27, %s41
    %s48 = sor.u32 %s46, %s47
    %p49 = scmp.eq.s32.totalorder %s48, 0
    %s51 = sadd.s32 %s50, 1
    %s52 = scalar_select %p49, %s50, %s51
    %p55 = pneg %p49
    %p56 = scmp.eq.s32.totalorder %s19, 3
    %p57 = por %p55, %p56
    %p58 = scmp.ne.s32.totalorder %s50, %s53
    %p59 = scmp.eq.s32.totalorder %s19, 0
    %p60 = por %p58, %p59
    %p61 = scmp.ne.s32.totalorder %s50, %s53
    %p62 = scmp.eq.s32.totalorder %s24, 3
    %p63 = por %p61, %p62
    %p64 = scmp.ne.s32.totalorder %s53, %s54
    %p65 = scmp.eq.s32.totalorder %s24, 0
    %p66 = por %p64, %p65
    %p67 = scmp.ne.s32.totalorder %s53, %s54
    %p68 = scmp.eq.s32.totalorder %s25, 3
    %p69 = por %p67, %p68
    %p71 = scmp.ne.s32.totalorder %s54, %s70
    %p72 = scmp.eq.s32.totalorder %s25, 0
    %p73 = por %p71, %p72
    %s74 = ssub.s32 %s26, %s45
    %p75 = scmp.eq.s32.totalorder %s74, 0
    %s77 = sadd.s32 %s76, 1
    %s78 = scalar_select %p75, %s76, %s77
    %p81 = pneg %p75
    %p82 = scmp.eq.s32.totalorder %s19, 3
    %p83 = por %p81, %p82
    %p84 = scmp.ne.s32.totalorder %s76, %s79
    %p85 = scmp.eq.s32.totalorder %s19, 0
    %p86 = por %p84, %p85
    %p87 = scmp.ne.s32.totalorder %s76, %s79
    %p88 = scmp.eq.s32.totalorder %s24, 3
    %p89 = por %p87, %p88
    %p90 = scmp.ne.s32.totalorder %s79, %s80
    %p91 = scmp.eq.s32.totalorder %s24, 0
    %p92 = por %p90, %p91
    %p93 = scmp.ne.s32.totalorder %s79, %s80
    %p94 = scmp.eq.s32.totalorder %s25, 3
    %p95 = por %p93, %p94
    %p97 = scmp.ne.s32.totalorder %s80, %s96
    %p98 = scmp.eq.s32.totalorder %s25, 0
    %p99 = por %p97, %p98
    %s100 = ssub.s32 %s26, %s45
    %p101 = scmp.eq.s32.totalorder %s100, 0
    %s103 = sadd.s32 %s102, 1
    %s104 = scalar_select %p101, %s102, %s103
    %p107 = pneg %p101
    %p108 = scmp.eq.s32.totalorder %s19, 3
    %p109 = por %p107, %p108
    %p110 = scmp.ne.s32.totalorder %s102, %s105
    %p111 = scmp.eq.s32.totalorder %s19, 0
    %p112 = por %p110, %p111
    %p113 = scmp.ne.s32.totalorder %s102, %s105
    %p114 = scmp.eq.s32.totalorder %s24, 3
    %p115 = por %p113, %p114
    %p116 = scmp.ne.s32.totalorder %s105, %s106
    %p117 = scmp.eq.s32.totalorder %s24, 0
    %p118 = por %p116, %p117
    %p119 = scmp.ne.s32.totalorder %s105, %s106
    %p120 = scmp.eq.s32.totalorder %s25, 3
    %p121 = por %p119, %p120
    %p123 = scmp.ne.s32.totalorder %s106, %s122
    %p124 = scmp.eq.s32.totalorder %s25, 0
    %p125 = por %p123, %p124
    %s126 = ssub.s32 %s26, %s45
    %p127 = scmp.eq.s32.totalorder %s126, 0
    %s129 = sadd.s32 %s128, 1
    %s130 = scalar_select %p127, %s128, %s129
    %p133 = pneg %p127
    %p134 = scmp.eq.s32.totalorder %s19, 3
    %p135 = por %p133, %p134
    %p136 = scmp.ne.s32.totalorder %s128, %s131
    %p137 = scmp.eq.s32.totalorder %s19, 0
    %p138 = por %p136, %p137
    %p139 = scmp.ne.s32.totalorder %s128, %s131
    %p140 = scmp.eq.s32.totalorder %s24, 3
    %p141 = por %p139, %p140
    %p142 = scmp.ne.s32.totalorder %s131, %s132
    %p143 = scmp.eq.s32.totalorder %s24, 0
    %p144 = por %p142, %p143
    %p145 = scmp.ne.s32.totalorder %s131, %s132
    %p146 = scmp.eq.s32.totalorder %s25, 3
    %p147 = por %p145, %p146
    %p149 = scmp.ne.s32.totalorder %s132, %s148
    %p150 = scmp.eq.s32.totalorder %s25, 0
    %p151 = por %p149, %p150
    %s152 = ssub.s32 %s26, %s45
    %p153 = scmp.eq.s32.totalorder %s152, 0
    %s155 = sadd.s32 %s154, 1
    %s156 = scalar_select %p153, %s154, %s155
    %p159 = pneg %p153
    %p160 = scmp.eq.s32.totalorder %s19, 3
    %p161 = por %p159, %p160
    %p162 = scmp.ne.s32.totalorder %s154, %s157
    %p163 = scmp.eq.s32.totalorder %s19, 0
    %p164 = por %p162, %p163
    %p165 = scmp.ne.s32.totalorder %s154, %s157
    %p166 = scmp.eq.s32.totalorder %s24, 3
    %p167 = por %p165, %p166
    %p168 = scmp.ne.s32.totalorder %s157, %s158
    %p169 = scmp.eq.s32.totalorder %s24, 0
    %p170 = por %p168, %p169
    %p171 = scmp.ne.s32.totalorder %s157, %s158
    %p172 = scmp.eq.s32.totalorder %s25, 3
    %p173 = por %p171, %p172
    %p175 = scmp.ne.s32.totalorder %s158, %s174
    %p176 = scmp.eq.s32.totalorder %s25, 0
    %p177 = por %p175, %p176
    %s178 = ssub.s32 %s26, %s45
    %p179 = scmp.eq.s32.totalorder %s178, 0
    %s181 = sadd.s32 %s180, 1
    %s182 = scalar_select %p179, %s180, %s181
    %p185 = pneg %p179
    %p186 = scmp.eq.s32.totalorder %s19, 3
    %p187 = por %p185, %p186
    %p188 = scmp.ne.s32.totalorder %s180, %s183
    %p189 = scmp.eq.s32.totalorder %s19, 0
    %p190 = por %p188, %p189
    %p191 = scmp.ne.s32.totalorder %s180, %s183
    %p192 = scmp.eq.s32.totalorder %s24, 3
    %p193 = por %p191, %p192
    %p194 = scmp.ne.s32.totalorder %s183, %s184
    %p195 = scmp.eq.s32.totalorder %s24, 0
    %p196 = por %p194, %p195
    %p197 = scmp.ne.s32.totalorder %s183, %s184
    %p198 = scmp.eq.s32.totalorder %s25, 3
    %p199 = por %p197, %p198
    %p201 = scmp.ne.s32.totalorder %s184, %s200
    %p202 = scmp.eq.s32.totalorder %s25, 0
    %p203 = por %p201, %p202
    %s204 = ssub.s32 %s26, %s45
    %p205 = scmp.eq.s32.totalorder %s204, 0
    %s207 = sadd.s32 %s206, 1
    %s208 = scalar_select %p205, %s206, %s207
    %p211 = pneg %p205
    %p212 = scmp.eq.s32.totalorder %s19, 3
    %p213 = por %p211, %p212
    %p214 = scmp.ne.s32.totalorder %s206, %s209
    %p215 = scmp.eq.s32.totalorder %s19, 0
    %p216 = por %p214, %p215
    %p217 = scmp.ne.s32.totalorder %s206, %s209
    %p218 = scmp.eq.s32.totalorder %s24, 3
    %p219 = por %p217, %p218
    %p220 = scmp.ne.s32.totalorder %s209, %s210
    %p221 = scmp.eq.s32.totalorder %s24, 0
    %p222 = por %p220, %p221
    %p223 = scmp.ne.s32.totalorder %s209, %s210
    %p224 = scmp.eq.s32.totalorder %s25, 3
    %p225 = por %p223, %p224
    %p227 = scmp.ne.s32.totalorder %s210, %s226
    %p228 = scmp.eq.s32.totalorder %s25, 0
    %p229 = por %p227, %p228
    %s230 = ssub.s32 %s26, %s45
    %p231 = scmp.eq.s32.totalorder %s230, 0
    %s233 = sadd.s32 %s232, 1
    %s234 = scalar_select %p231, %s232, %s233
    %p237 = pneg %p231
    %p238 = scmp.eq.s32.totalorder %s19, 3
    %p239 = por %p237, %p238
    %p240 = scmp.ne.s32.totalorder %s232, %s235
    %p241 = scmp.eq.s32.totalorder %s19, 0
    %p242 = por %p240, %p241
    %p243 = scmp.ne.s32.totalorder %s232, %s235
    %p244 = scmp.eq.s32.totalorder %s24, 3
    %p245 = por %p243, %p244
    %p246 = scmp.ne.s32.totalorder %s235, %s236
    %p247 = scmp.eq.s32.totalorder %s24, 0
    %p248 = por %p246, %p247
    %p249 = scmp.ne.s32.totalorder %s235, %s236
    %p250 = scmp.eq.s32.totalorder %s25, 3
    %p251 = por %p249, %p250
    %p253 = scmp.ne.s32.totalorder %s236, %s252
    %p254 = scmp.eq.s32.totalorder %s25, 0
    %p255 = por %p253, %p254
    %s256 = ssub.s32 %s26, %s45
    %p257 = scmp.eq.s32.totalorder %s256, 0
    %s259 = sadd.s32 %s258, 1
    %s260 = scalar_select %p257, %s258, %s259
    %p263 = pneg %p257
    %p264 = scmp.eq.s32.totalorder %s19, 3
    %p265 = por %p263, %p264
    %p266 = scmp.ne.s32.totalorder %s258, %s261
    %p267 = scmp.eq.s32.totalorder %s19, 0
    %p268 = por %p266, %p267
    %p269 = scmp.ne.s32.totalorder %s258, %s261
    %p270 = scmp.eq.s32.totalorder %s24, 3
    %p271 = por %p269, %p270
    %p272 = scmp.ne.s32.totalorder %s261, %s262
    %p273 = scmp.eq.s32.totalorder %s24, 0
    %p274 = por %p272, %p273
    %p275 = scmp.ne.s32.totalorder %s261, %s262
    %p276 = scmp.eq.s32.totalorder %s25, 3
    %p277 = por %p275, %p276
    %p279 = scmp.ne.s32.totalorder %s262, %s278
    %p280 = scmp.eq.s32.totalorder %s25, 0
    %p281 = por %p279, %p280
    %s282 = ssub.s32 %s26, %s45
    %s283 = ssub.s32 %s28, %s37
    %s284 = sor.u32 %s282, %s283
    %p285 = scmp.eq.s32.totalorder %s284, 0
    %s287 = sadd.s32 %s286, 1
    %s288 = scalar_select %p285, %s286, %s287
    %p291 = pneg %p285
    %p292 = scmp.eq.s32.totalorder %s19, 3
    %p293 = por %p291, %p292
    %p294 = scmp.ne.s32.totalorder %s286, %s289
    %p295 = scmp.eq.s32.totalorder %s19, 0
    %p296 = por %p294, %p295
    %p297 = scmp.ne.s32.totalorder %s286, %s289
    %p298 = scmp.eq.s32.totalorder %s24, 3
    %p299 = por %p297, %p298
    %p300 = scmp.ne.s32.totalorder %s289, %s290
    %p301 = scmp.eq.s32.totalorder %s24, 0
    %p302 = por %p300, %p301
    %p303 = scmp.ne.s32.totalorder %s289, %s290
    %p304 = scmp.eq.s32.totalorder %s25, 3
    %p305 = por %p303, %p304
    %p307 = scmp.ne.s32.totalorder %s290, %s306
    %p308 = scmp.eq.s32.totalorder %s25, 0
    %p309 = por %p307, %p308
    %s310 = ssub.s32 %s26, %s45
    %s311 = ssub.s32 %s28, %s37
    %s312 = sor.u32 %s310, %s311
    %p313 = scmp.eq.s32.totalorder %s312, 0
    %s315 = sadd.s32 %s314, 1
    %s316 = scalar_select %p313, %s314, %s315
    %p319 = pneg %p313
    %p320 = scmp.eq.s32.totalorder %s19, 3
    %p321 = por %p319, %p320
    %p322 = scmp.ne.s32.totalorder %s314, %s317
    %p323 = scmp.eq.s32.totalorder %s19, 0
    %p324 = por %p322, %p323
    %p325 = scmp.ne.s32.totalorder %s314, %s317
    %p326 = scmp.eq.s32.totalorder %s24, 3
    %p327 = por %p325, %p326
    %p328 = scmp.ne.s32.totalorder %s317, %s318
    %p329 = scmp.eq.s32.totalorder %s24, 0
    %p330 = por %p328, %p329
    %p331 = scmp.ne.s32.totalorder %s317, %s318
    %p332 = scmp.eq.s32.totalorder %s25, 3
    %p333 = por %p331, %p332
    %p335 = scmp.ne.s32.totalorder %s318, %s334
    %p336 = scmp.eq.s32.totalorder %s25, 0
    %p337 = por %p335, %p336
    %s338 = ssub.s32 %s26, %s45
    %s339 = ssub.s32 %s28, %s37
    %s340 = sor.u32 %s338, %s339
    %p341 = scmp.eq.s32.totalorder %s340, 0
    %s343 = sadd.s32 %s342, 1
    %s344 = scalar_select %p341, %s342, %s343
    %p347 = pneg %p341
    %p348 = scmp.eq.s32.totalorder %s19, 3
    %p349 = por %p347, %p348
    %p350 = scmp.ne.s32.totalorder %s342, %s345
    %p351 = scmp.eq.s32.totalorder %s19, 0
    %p352 = por %p350, %p351
    %p353 = scmp.ne.s32.totalorder %s342, %s345
    %p354 = scmp.eq.s32.totalorder %s24, 3
    %p355 = por %p353, %p354
    %p356 = scmp.ne.s32.totalorder %s345, %s346
    %p357 = scmp.eq.s32.totalorder %s24, 0
    %p358 = por %p356, %p357
    %p359 = scmp.ne.s32.totalorder %s345, %s346
    %p360 = scmp.eq.s32.totalorder %s25, 3
    %p361 = por %p359, %p360
    %p363 = scmp.ne.s32.totalorder %s346, %s362
    %p364 = scmp.eq.s32.totalorder %s25, 0
    %p365 = por %p363, %p364
    %s366 = ssub.s32 %s26, %s45
    %p367 = scmp.eq.s32.totalorder %s366, 0
    %s369 = sadd.s32 %s368, 1
    %s370 = scalar_select %p367, %s368, %s369
    %p373 = pneg %p367
    %p374 = scmp.eq.s32.totalorder %s19, 3
    %p375 = por %p373, %p374
    %p376 = scmp.ne.s32.totalorder %s368, %s371
    %p377 = scmp.eq.s32.totalorder %s19, 0
    %p378 = por %p376, %p377
    %p379 = scmp.ne.s32.totalorder %s368, %s371
    %p380 = scmp.eq.s32.totalorder %s24, 3
    %p381 = por %p379, %p380
    %p382 = scmp.ne.s32.totalorder %s371, %s372
    %p383 = scmp.eq.s32.totalorder %s24, 0
    %p384 = por %p382, %p383
    %p385 = scmp.ne.s32.totalorder %s371, %s372
    %p386 = scmp.eq.s32.totalorder %s25, 3
    %p387 = por %p385, %p386
    %p389 = scmp.ne.s32.totalorder %s372, %s388
    %p390 = scmp.eq.s32.totalorder %s25, 0
    %p391 = por %p389, %p390
    %s392 = ssub.s32 %s26, %s45
    %s393 = ssub.s32 %s27, %s41
    %s394 = sor.u32 %s392, %s393
    %p395 = scmp.eq.s32.totalorder %s394, 0
    %s397 = sadd.s32 %s396, 1
    %s398 = scalar_select %p395, %s396, %s397
    %p401 = pneg %p395
    %p402 = scmp.eq.s32.totalorder %s19, 3
    %p403 = por %p401, %p402
    %p404 = scmp.ne.s32.totalorder %s396, %s399
    %p405 = scmp.eq.s32.totalorder %s19, 0
    %p406 = por %p404, %p405
    %p407 = scmp.ne.s32.totalorder %s396, %s399
    %p408 = scmp.eq.s32.totalorder %s24, 3
    %p409 = por %p407, %p408
    %p410 = scmp.ne.s32.totalorder %s399, %s400
    %p411 = scmp.eq.s32.totalorder %s24, 0
    %p412 = por %p410, %p411
    %p413 = scmp.ne.s32.totalorder %s399, %s400
    %p414 = scmp.eq.s32.totalorder %s25, 3
    %p415 = por %p413, %p414
    %p417 = scmp.ne.s32.totalorder %s400, %s416
    %p418 = scmp.eq.s32.totalorder %s25, 0
    %p419 = por %p417, %p418
    %p420 = scmp.le.s32.totalorder 1, %s19
    %p421 = scmp.lt.s32.totalorder %s19, 5
    %p422 = pnand %p420, %p421
    %p423 = pneg %p422
    // Predicated region
    $region9: #{mixer_block.1} parent=5 // pred_check
      _
    $region10: #{mixer_block.1} parent=5 // pred_check_branch
      %425 = sbr.rel (%p422) target = $region12
    $region11: #{mixer_block.1} parent=5 // pred_region
      %s426 = ssub.s32 %s19, 1
    $region12: #{mixer_block.1} parent=5 // pred_fallthru
      _
    %p427 = scmp.lt.s32.totalorder %s19, 4
    // Predicated region
    $region13: #{mixer_block.1} parent=5 // pred_check
      %p428 = pneg %p427
    $region14: #{mixer_block.1} parent=5 // pred_check_branch
      %430 = sbr.rel (%p428) target = $region16
    $region15: #{mixer_block.1} parent=5 // pred_region
      // Predicated region
      $region17: #{mixer_block.1} parent=15 // pred_check
        %p431 = pneg %p60
      $region18: #{mixer_block.1} parent=15 // pred_check_branch
        %433 = sbr.rel (%p431) target = $region20
      $region19: #{mixer_block.1} parent=15 // pred_region
        %p434 = scmp.lt.s32.totalorder %s26, 1
        %s435 = scalar_select %p434, %s26, 1
        %p436 = scmp.lt.s32.totalorder %s27, 1
        %s437 = scalar_select %p436, %s27, 1
        %s438 = smul.addr %s437, 2
        %s439 = smul.addr %s435, 4
        %s440 = sadd.s32 %s438, %s439
        %s441 = smul.addr %s440, 8
        %s442 = scalar_lea.vmem %s0, %s441
      $region20: #{mixer_block.1} parent=15 // pred_fallthru
        _
      // Predicated region
      $region21: #{mixer_block.1} parent=15 // pred_check
        %p443 = pneg %p86
      $region22: #{mixer_block.1} parent=15 // pred_check_branch
        %445 = sbr.rel (%p443) target = $region24
      $region23: #{mixer_block.1} parent=15 // pred_region
        %p446 = scmp.lt.s32.totalorder %s26, 1
        %s447 = scalar_select %p446, %s26, 1
        %s448 = scalar_lea.vmem %s1, %s447
      $region24: #{mixer_block.1} parent=15 // pred_fallthru
        _
      // Predicated region
      $region25: #{mixer_block.1} parent=15 // pred_check
        %p449 = pneg %p112
      $region26: #{mixer_block.1} parent=15 // pred_check_branch
        %451 = sbr.rel (%p449) target = $region28
      $region27: #{mixer_block.1} parent=15 // pred_region
        %p452 = scmp.lt.s32.totalorder %s26, 1
        %s453 = scalar_select %p452, %s26, 1
        %s454 = scalar_lea.vmem %s2, %s453
      $region28: #{mixer_block.1} parent=15 // pred_fallthru
        _
      // Predicated region
      $region29: #{mixer_block.1} parent=15 // pred_check
        %p455 = pneg %p138
      $region30: #{mixer_block.1} parent=15 // pred_check_branch
        %457 = sbr.rel (%p455) target = $region32
      $region31: #{mixer_block.1} parent=15 // pred_region
        %p458 = scmp.lt.s32.totalorder %s26, 1
        %s459 = scalar_select %p458, %s26, 1
        %s460 = smul.addr %s459, 2
        %s461 = smul.addr %s460, 4
        %s462 = scalar_lea.vmem %s3, %s461
      $region32: #{mixer_block.1} parent=15 // pred_fallthru
        _
      // Predicated region
      $region33: #{mixer_block.1} parent=15 // pred_check
        %p463 = pneg %p164
      $region34: #{mixer_block.1} parent=15 // pred_check_branch
        %465 = sbr.rel (%p463) target = $region36
      $region35: #{mixer_block.1} parent=15 // pred_region
        %p466 = scmp.lt.s32.totalorder %s26, 1
        %s467 = scalar_select %p466, %s26, 1
        %s468 = scalar_lea.vmem %s4, %s467
      $region36: #{mixer_block.1} parent=15 // pred_fallthru
        _
      // Predicated region
      $region37: #{mixer_block.1} parent=15 // pred_check
        %p469 = pneg %p190
      $region38: #{mixer_block.1} parent=15 // pred_check_branch
        %471 = sbr.rel (%p469) target = $region40
      $region39: #{mixer_block.1} parent=15 // pred_region
        %p472 = scmp.lt.s32.totalorder %s26, 1
        %s473 = scalar_select %p472, %s26, 1
        %s474 = smul.addr %s473, 4
        %s475 = smul.addr %s474, 4
        %s476 = scalar_lea.vmem %s5, %s475
      $region40: #{mixer_block.1} parent=15 // pred_fallthru
        _
      // Predicated region
      $region41: #{mixer_block.1} parent=15 // pred_check
        %p477 = pneg %p216
      $region42: #{mixer_block.1} parent=15 // pred_check_branch
        %479 = sbr.rel (%p477) target = $region44
      $region43: #{mixer_block.1} parent=15 // pred_region
        %p480 = scmp.lt.s32.totalorder %s26, 1
        %s481 = scalar_select %p480, %s26, 1
        %s482 = smul.addr %s481, 2
        %s483 = smul.addr %s482, 8
        %s484 = scalar_lea.vmem %s6, %s483
      $region44: #{mixer_block.1} parent=15 // pred_fallthru
        _
      // Predicated region
      $region45: #{mixer_block.1} parent=15 // pred_check
        %p485 = pneg %p242
      $region46: #{mixer_block.1} parent=15 // pred_check_branch
        %487 = sbr.rel (%p485) target = $region48
      $region47: #{mixer_block.1} parent=15 // pred_region
        %p488 = scmp.lt.s32.totalorder %s26, 1
        %s489 = scalar_select %p488, %s26, 1
        %s490 = scalar_lea.vmem %s7, %s489
      $region48: #{mixer_block.1} parent=15 // pred_fallthru
        _
      // Predicated region
      $region49: #{mixer_block.1} parent=15 // pred_check
        %p491 = pneg %p268
      $region50: #{mixer_block.1} parent=15 // pred_check_branch
        %493 = sbr.rel (%p491) target = $region52
      $region51: #{mixer_block.1} parent=15 // pred_region
        %p494 = scmp.lt.s32.totalorder %s26, 1
        %s495 = scalar_select %p494, %s26, 1
        %s496 = scalar_lea.vmem %s8, %s495
      $region52: #{mixer_block.1} parent=15 // pred_fallthru
        _
      // Predicated region
      $region53: #{mixer_block.1} parent=15 // pred_check
        %p497 = pneg %p296
      $region54: #{mixer_block.1} parent=15 // pred_check_branch
        %499 = sbr.rel (%p497) target = $region56
      $region55: #{mixer_block.1} parent=15 // pred_region
        %p500 = scmp.lt.s32.totalorder %s26, 1
        %s501 = scalar_select %p500, %s26, 1
        %p502 = scmp.lt.s32.totalorder %s28, 0
        %s503 = scalar_select %p502, %s28, 0
        %s504 = smul.addr %s501, 2
        %s505 = sadd.s32 %s503, %s504
        %s506 = smul.addr %s505, 4
        %s507 = scalar_lea.vmem %s9, %s506
      $region56: #{mixer_block.1} parent=15 // pred_fallthru
        _
      // Predicated region
      $region57: #{mixer_block.1} parent=15 // pred_check
        %p508 = pneg %p324
      $region58: #{mixer_block.1} parent=15 // pred_check_branch
        %510 = sbr.rel (%p508) target = $region60
      $region59: #{mixer_block.1} parent=15 // pred_region
        %p511 = scmp.lt.s32.totalorder %s26, 1
        %s512 = scalar_select %p511, %s26, 1
        %p513 = scmp.lt.s32.totalorder %s28, 0
        %s514 = scalar_select %p513, %s28, 0
        %s515 = sadd.s32 %s514, %s512
        %s516 = scalar_lea.vmem %s10, %s515
      $region60: #{mixer_block.1} parent=15 // pred_fallthru
        _
      // Predicated region
      $region61: #{mixer_block.1} parent=15 // pred_check
        %p517 = pneg %p352
      $region62: #{mixer_block.1} parent=15 // pred_check_branch
        %519 = sbr.rel (%p517) target = $region64
      $region63: #{mixer_block.1} parent=15 // pred_region
        %s520 = smul.u32 4, %s28
        %p521 = scmp.lt.s32.totalorder %s26, 1
        %s522 = scalar_select %p521, %s26, 1
        %p523 = scmp.lt.s32.totalorder %s520, 3
        %s524 = scalar_select %p523, %s520, 3
        %s525 = smul.addr %s522, 4
        %s526 = sadd.s32 %s524, %s525
        %s527 = smul.addr %s526, 4
        %s528 = scalar_lea.vmem %s11, %s527
        %s529 = smul.u32 4, %s28
      $region64: #{mixer_block.1} parent=15 // pred_fallthru
        _
      // Predicated region
      $region65: #{mixer_block.1} parent=15 // pred_check
        %p530 = pneg %p378
      $region66: #{mixer_block.1} parent=15 // pred_check_branch
        %532 = sbr.rel (%p530) target = $region68
      $region67: #{mixer_block.1} parent=15 // pred_region
        %p533 = scmp.lt.s32.totalorder %s26, 1
        %s534 = scalar_select %p533, %s26, 1
        %s535 = scalar_lea.vmem %s12, %s534
      $region68: #{mixer_block.1} parent=15 // pred_fallthru
        _
    $region16: #{mixer_block.1} parent=5 // pred_fallthru
      _
    %p536 = scmp.le.s32.totalorder 1, %s19
    %p537 = scmp.lt.s32.totalorder %s19, 5
    %p538 = pnand %p536, %p537
    %p539 = pneg %p538
    // Predicated region
    $region69: #{mixer_block.1} parent=5 // pred_check
      _
    $region70: #{mixer_block.1} parent=5 // pred_check_branch
      %541 = sbr.rel (%p538) target = $region72
    $region71: #{mixer_block.1} parent=5 // pred_region
      %s542 = ssub.s32 %s19, 1
      %p543 = scmp.lt.s32.totalorder %s29, 1
      %s544 = scalar_select %p543, %s29, 1
      %p545 = scmp.lt.s32.totalorder %s30, 1
      %s546 = scalar_select %p545, %s30, 1
      %s547 = smul.addr %s546, 2
      %s548 = smul.addr %s544, 4
      %s549 = sadd.s32 %s547, %s548
      %s550 = smul.addr %s549, 8
      %s551 = scalar_lea.vmem %s0, %s550
      %p552 = pneg %p66
      %p553 = pneg %p63
      %p554 = scmp.lt.s32.totalorder %s29, 1
      %s555 = scalar_select %p554, %s29, 1
      %s556 = scalar_lea.vmem %s1, %s555
      %p557 = pneg %p92
      %p558 = pneg %p89
      %p559 = scmp.lt.s32.totalorder %s29, 1
      %s560 = scalar_select %p559, %s29, 1
      %s561 = scalar_lea.vmem %s2, %s560
      %p562 = pneg %p118
      %p563 = pneg %p115
      %p564 = scmp.lt.s32.totalorder %s29, 1
      %s565 = scalar_select %p564, %s29, 1
      %s566 = smul.addr %s565, 2
      %s567 = smul.addr %s566, 4
      %s568 = scalar_lea.vmem %s3, %s567
      %p569 = pneg %p144
      %p570 = pneg %p141
      %p571 = scmp.lt.s32.totalorder %s29, 1
      %s572 = scalar_select %p571, %s29, 1
      %s573 = scalar_lea.vmem %s4, %s572
      %p574 = pneg %p170
      %p575 = pneg %p167
      %p576 = scmp.lt.s32.totalorder %s29, 1
      %s577 = scalar_select %p576, %s29, 1
      %s578 = smul.addr %s577, 4
      %s579 = smul.addr %s578, 4
      %s580 = scalar_lea.vmem %s5, %s579
      %p581 = pneg %p196
      %p582 = pneg %p193
      %p583 = scmp.lt.s32.totalorder %s29, 1
      %s584 = scalar_select %p583, %s29, 1
      %s585 = smul.addr %s584, 2
      %s586 = smul.addr %s585, 8
      %s587 = scalar_lea.vmem %s6, %s586
      %p588 = pneg %p222
      %p589 = pneg %p219
      %p590 = scmp.lt.s32.totalorder %s29, 1
      %s591 = scalar_select %p590, %s29, 1
      %s592 = scalar_lea.vmem %s7, %s591
      %p593 = pneg %p248
      %p594 = pneg %p245
      %p595 = scmp.lt.s32.totalorder %s29, 1
      %s596 = scalar_select %p595, %s29, 1
      %s597 = scalar_lea.vmem %s8, %s596
      %p598 = pneg %p274
      %p599 = pneg %p271
      %p600 = scmp.lt.s32.totalorder %s29, 1
      %s601 = scalar_select %p600, %s29, 1
      %p602 = scmp.lt.s32.totalorder %s31, 0
      %s603 = scalar_select %p602, %s31, 0
      %s604 = smul.addr %s601, 2
      %s605 = sadd.s32 %s603, %s604
      %s606 = smul.addr %s605, 4
      %s607 = scalar_lea.vmem %s9, %s606
      %p608 = pneg %p302
      %p609 = pneg %p299
      %p610 = scmp.lt.s32.totalorder %s29, 1
      %s611 = scalar_select %p610, %s29, 1
      %p612 = scmp.lt.s32.totalorder %s31, 0
      %s613 = scalar_select %p612, %s31, 0
      %s614 = sadd.s32 %s613, %s611
      %s615 = scalar_lea.vmem %s10, %s614
      %p616 = pneg %p330
      %p617 = pneg %p327
      %s618 = smul.u32 4, %s31
      %p619 = scmp.lt.s32.totalorder %s29, 1
      %s620 = scalar_select %p619, %s29, 1
      %p621 = scmp.lt.s32.totalorder %s618, 3
      %s622 = scalar_select %p621, %s618, 3
      %s623 = smul.addr %s620, 4
      %s624 = sadd.s32 %s622, %s623
      %s625 = smul.addr %s624, 4
      %s626 = scalar_lea.vmem %s11, %s625
      %p627 = pneg %p358
      %p628 = pneg %p355
      %p629 = scmp.lt.s32.totalorder %s29, 1
      %s630 = scalar_select %p629, %s29, 1
      %s631 = scalar_lea.vmem %s12, %s630
      %p632 = pneg %p384
      %p633 = pneg %p381
      %p634 = pneg %p412
      %p635 = pneg %p409
      %p636 = scmp.lt.s32.totalorder %s29, 1
      %s637 = scalar_select %p636, %s29, 1
      %p638 = scmp.lt.s32.totalorder %s30, 1
      %s639 = scalar_select %p638, %s30, 1
      %s640 = smul.addr %s639, 2
      %s641 = smul.addr %s637, 4
      %s642 = sadd.s32 %s640, %s641
      %s643 = smul.addr %s642, 8
      %s644 = scalar_lea.vmem %s13, %s643
      %p645 = scmp.lt.s32.totalorder %s29, 1
      %s646 = scalar_select %p645, %s29, 1
      %p647 = scmp.lt.s32.totalorder %s30, 1
      %s648 = scalar_select %p647, %s30, 1
      %s649 = smul.addr %s648, 2
      %s650 = smul.addr %s646, 4
      %s651 = sadd.s32 %s649, %s650
      %s652 = smul.addr %s651, 8
      %s653 = scalar_lea.vmem %s0, %s652
      %p654 = scmp.lt.s32.totalorder %s29, 1
      %s655 = scalar_select %p654, %s29, 1
      %s656 = scalar_lea.vmem %s1, %s655
      %p657 = scmp.lt.s32.totalorder %s29, 1
      %s658 = scalar_select %p657, %s29, 1
      %s659 = scalar_lea.vmem %s2, %s658
      %p660 = scmp.lt.s32.totalorder %s29, 1
      %s661 = scalar_select %p660, %s29, 1
      %s662 = smul.addr %s661, 2
      %s663 = smul.addr %s662, 4
      %s664 = scalar_lea.vmem %s3, %s663
      %p665 = scmp.lt.s32.totalorder %s29, 1
      %s666 = scalar_select %p665, %s29, 1
      %s667 = scalar_lea.vmem %s4, %s666
      %p668 = scmp.lt.s32.totalorder %s29, 1
      %s669 = scalar_select %p668, %s29, 1
      %s670 = smul.addr %s669, 4
      %s671 = smul.addr %s670, 4
      %s672 = scalar_lea.vmem %s5, %s671
      %p673 = scmp.lt.s32.totalorder %s29, 1
      %s674 = scalar_select %p673, %s29, 1
      %s675 = smul.addr %s674, 2
      %s676 = smul.addr %s675, 8
      %s677 = scalar_lea.vmem %s6, %s676
      %p678 = scmp.lt.s32.totalorder %s29, 1
      %s679 = scalar_select %p678, %s29, 1
      %s680 = scalar_lea.vmem %s7, %s679
      %p681 = scmp.lt.s32.totalorder %s29, 1
      %s682 = scalar_select %p681, %s29, 1
      %s683 = scalar_lea.vmem %s8, %s682
      %p684 = scmp.lt.s32.totalorder %s29, 1
      %s685 = scalar_select %p684, %s29, 1
      %p686 = scmp.lt.s32.totalorder %s31, 0
      %s687 = scalar_select %p686, %s31, 0
      %s688 = smul.addr %s685, 2
      %s689 = sadd.s32 %s687, %s688
      %s690 = smul.addr %s689, 4
      %s691 = scalar_lea.vmem %s9, %s690
      %p692 = scmp.lt.s32.totalorder %s29, 1
      %s693 = scalar_select %p692, %s29, 1
      %p694 = scmp.lt.s32.totalorder %s31, 0
      %s695 = scalar_select %p694, %s31, 0
      %s696 = sadd.s32 %s695, %s693
      %s697 = scalar_lea.vmem %s10, %s696
      %s698 = smul.u32 4, %s31
      %p699 = scmp.lt.s32.totalorder %s29, 1
      %s700 = scalar_select %p699, %s29, 1
      %p701 = scmp.lt.s32.totalorder %s698, 3
      %s702 = scalar_select %p701, %s698, 3
      %s703 = smul.addr %s700, 4
      %s704 = sadd.s32 %s702, %s703
      %s705 = smul.addr %s704, 4
      %s706 = scalar_lea.vmem %s11, %s705
      %s707 = smul.u32 4, %s31
      %p708 = scmp.lt.s32.totalorder %s29, 1
      %s709 = scalar_select %p708, %s29, 1
      %s710 = scalar_lea.vmem %s12, %s709
      %p711 = scmp.lt.s32.totalorder %s29, 1
      %s712 = scalar_select %p711, %s29, 1
      %p713 = scmp.lt.s32.totalorder %s30, 1
      %s714 = scalar_select %p713, %s30, 1
      %s715 = smul.addr %s714, 2
      %s716 = smul.addr %s712, 4
      %s717 = sadd.s32 %s715, %s716
      %s718 = smul.addr %s717, 8
      %s719 = scalar_lea.vmem %s13, %s718
      %p721 = scmp.eq.s32.totalorder %s31, 0
      // Predicated region
      $region73: #{mixer_block.1} parent=71 // pred_check
        %p722 = pneg %p721
      $region74: #{mixer_block.1} parent=71 // pred_check_branch
        %724 = sbr.rel (%p722) target = $region76
      $region75: #{mixer_block.1} parent=71 // pred_region
        %v725 = vld [vmem:[%s653] sm:$0xff]
        %v726 = vld [vmem:[%s653 + $0x8] sm:$0xff]
        %v727 = vld [vmem:[%s656] sm:$0x1]
        %v728 = vld [vmem:[%s659] sm:$0x1]
        %vm729 = vcmask 130048
        %v730 = vsel %vm729, %v725, 0.0
        %731 = vadd.xlane.f32.xlu0 %v730
        %v732 = vpop.xlane.xlu0 %731
        %v733 = vsel %vm729, %v726, 0.0
        %734 = vadd.xlane.f32.xlu0 %v733
        %v735 = vpop.xlane.xlu0 %734
        %v736 = vrcp.pop 16.0
        %v737 = vmul.f32 16.0, %v736
        %v738 = vsub.f32 1.0, %v737
        %v739 = vmul.f32 %v736, %v738
        %v740 = vadd.f32 %v736, %v739
        %vm741 = vweird.f32 %v736
        %v742 = vsel %vm741, %v736, %v740
        %v743 = vmul.f32 %v732, %v742
        %v744 = vmul.f32 %v735, %v742
        %v745 = vsub.f32 %v725, %v743
        %v746 = vsub.f32 %v726, %v744
        %v747 = vmul.f32 %v745, %v745
        %v748 = vmul.f32 %v746, %v746
        %v749 = vsel %vm729, %v747, 0.0
        %750 = vadd.xlane.f32.xlu0 %v749
        %v751 = vpop.xlane.xlu0 %750
        %v752 = vsel %vm729, %v748, 0.0
        %753 = vadd.xlane.f32.xlu0 %v752
        %v754 = vpop.xlane.xlu0 %753
        %v755 = vmul.f32 %v751, %v742
        %v756 = vmul.f32 %v754, %v742
        %v757 = vadd.f32 %v755, 1e-05
        %v758 = vadd.f32 %v756, 1e-05
        %v759 = vrsqrt.pop %v757
        %v760 = vmul.f32 %v759, %v757
        %v761 = vmul.f32 %v760, %v759
        %v762 = vmul.f32 0.5, %v761
        %v763 = vsub.f32 1.5, %v762
        %v764 = vmul.f32 %v759, %v763
        %vm765 = vweird.f32 %v757
        %vm766 = vweird.f32 %v759
        %vm767 = vmor %vm765, %vm766
        %v768 = vsel %vm767, %v759, %v764
        %v769 = vrsqrt.pop %v758
        %v770 = vmul.f32 %v769, %v758
        %v771 = vmul.f32 %v770, %v769
        %v772 = vmul.f32 0.5, %v771
        %v773 = vsub.f32 1.5, %v772
        %v774 = vmul.f32 %v769, %v773
        %vm775 = vweird.f32 %v758
        %vm776 = vweird.f32 %v769
        %vm777 = vmor %vm775, %vm776
        %v778 = vsel %vm777, %v769, %v774
        %v779 = vmul.f32 %v745, %v768
        %v780 = vmul.f32 %v746, %v778
        %v782 = vperm.slane %v727, 0
        %v784 = vmul.f32 %v779, %v782
        %v785 = vmul.f32 %v780, %v782
        %v787 = vperm.slane %v728, 0
        %v789 = vadd.f32 %v784, %v787
        %v790 = vadd.f32 %v785, %v787
        %v791 = vld [vmem:[%s664] sm:$0xf]
        %v792 = vld [vmem:[%s664 + $0x4] sm:$0xf]
        %v793 = vpack.c.bf16 %v790, %v789
        %v794 = vld [vmem:[%s667] sm:$0x1]
        %v796 = vperm.slane %v794, 0
        %798 = vxpose.xlu0.c.b16.start [1/8] %v793, 128
        %799 = vxpose.xlu0.c.b16.cont [2/8] 0, 128
        %800 = vxpose.xlu0.c.b16.cont [3/8] 0, 128
        %801 = vxpose.xlu0.c.b16.cont [4/8] 0, 128
        %802 = vxpose.xlu0.c.b16.cont [5/8] 0, 128
        %803 = vxpose.xlu0.c.b16.cont [6/8] 0, 128
        %804 = vxpose.xlu0.c.b16.cont [7/8] 0, 128
        %805 = vxpose.xlu0.c.b16.end [8/8] 0, 128
        %v806 = vpop.trf.xlu0
        %v807 = vpop.trf.xlu0
        %v808 = vpop.trf.xlu0
        %v809 = vpop.trf.xlu0
        %v810 = vpop.trf.xlu0
        %v811 = vpop.trf.xlu0
        %v812 = vpop.trf.xlu0
        %v813 = vpop.trf.xlu0
        %v816 = vunpack.c.l.b16 %v791
        %v817 = vunpack.c.l.b16 %v792
        %v818 = vpack.c.b16 %v817, %v816
        %v821 = vsel %vm729, %v806, 0
        %823 = vmatpush.bf16.msra.mxu0 0
        %824 = vmatpush.bf16.msra.mxu0 0
        %825 = vmatpush.bf16.msra.mxu0 0
        %826 = vmatpush.bf16.msra.mxu0 0
        %827 = vmatpush.bf16.msra.mxu0 0
        %828 = vmatpush.bf16.msra.mxu0 0
        %829 = vmatpush.bf16.msra.mxu0 0
        %830 = vmatpush.bf16.msra.mxu0 %v818
        %831 = vmatmul.bf16.gmra.mxu0 %v821
        %v832 = vpop.f32.mrf.mxu0
        %v833 = vadd.f32 %v796, %v832
        %v834 = vpop.f32.mrf.mxu0
        %v835 = vadd.f32 %v796, %v834
        %836 = vdwg.mxu0
        %v837 = vmul.f32 %v833, 0.5
        %v838 = vmul.f32 %v835, 0.5
        %v839 = vmul.f32 %v833, 0.70710677
        %v840 = vmul.f32 %v835, 0.70710677
        %v841 = vmul.f32 %v839, %v839
        %v842 = vmin.f32 16.0, %v841
        %v843 = vmul.f32 %v842, 2.1237322e-06
        %v844 = vadd.f32 %v843, 0.00028619796
        %v845 = vmul.f32 %v842, %v844
        %v846 = vadd.f32 %v845, 0.0036580483
        %v847 = vmul.f32 %v842, %v846
        %v848 = vadd.f32 %v847, 0.05243302
        %v849 = vmul.f32 %v842, %v848
        %v850 = vadd.f32 %v849, 0.18741608
        %v851 = vmul.f32 %v842, %v850
        %v852 = vadd.f32 %v851, 1.1283791
        %v853 = vmul.f32 %v839, %v852
        %v854 = vmul.f32 %v842, 3.8918573e-05
        %v855 = vadd.f32 %v854, 0.001143296
        %v856 = vmul.f32 %v842, %v855
        %v857 = vadd.f32 %v856, 0.014752088
        %v858 = vmul.f32 %v842, %v857
        %v859 = vadd.f32 %v858, 0.112945676
        %v860 = vmul.f32 %v842, %v859
        %v861 = vadd.f32 %v860, 0.4994258
        %v862 = vmul.f32 %v842, %v861
        %v863 = vadd.f32 %v862, 1.0
        %v864 = vrcp.pop %v863
        %v865 = vmul.f32 %v863, %v864
        %v866 = vsub.f32 1.0, %v865
        %v867 = vmul.f32 %v864, %v866
        %v868 = vadd.f32 %v864, %v867
        %vm869 = vweird.f32 %v863
        %vm870 = vweird.f32 %v864
        %vm871 = vmor %vm869, %vm870
        %v872 = vsel %vm871, %v864, %v868
        %v873 = vand.u32 2147483647, %v863
        %vm874 = vcmp.eq.f32.partialorder %v873, 8.507059e+37
        %v875 = vand.u32 %v863, 2147483648
        %v876 = vor.u32 1.1754944e-38, %v875
        %v877 = vsel %vm874, %v876, %v872
        %v878 = vmul.f32 %v853, %v877
        %v879 = vmin.f32 %v878, 1.0
        %v880 = vmax.f32 %v879, -1.0
        %v881 = vmul.f32 %v840, %v840
        %v882 = vmin.f32 16.0, %v881
        %v883 = vmul.f32 %v882, 2.1237322e-06
        %v884 = vadd.f32 %v883, 0.00028619796
        %v885 = vmul.f32 %v882, %v884
        %v886 = vadd.f32 %v885, 0.0036580483
        %v887 = vmul.f32 %v882, %v886
        %v888 = vadd.f32 %v887, 0.05243302
        %v889 = vmul.f32 %v882, %v888
        %v890 = vadd.f32 %v889, 0.18741608
        %v891 = vmul.f32 %v882, %v890
        %v892 = vadd.f32 %v891, 1.1283791
        %v893 = vmul.f32 %v840, %v892
        %v894 = vmul.f32 %v882, 3.8918573e-05
        %v895 = vadd.f32 %v894, 0.001143296
        %v896 = vmul.f32 %v882, %v895
        %v897 = vadd.f32 %v896, 0.014752088
        %v898 = vmul.f32 %v882, %v897
        %v899 = vadd.f32 %v898, 0.112945676
        %v900 = vmul.f32 %v882, %v899
        %v901 = vadd.f32 %v900, 0.4994258
        %v902 = vmul.f32 %v882, %v901
        %v903 = vadd.f32 %v902, 1.0
        %v904 = vrcp.pop %v903
        %v905 = vmul.f32 %v903, %v904
        %v906 = vsub.f32 1.0, %v905
        %v907 = vmul.f32 %v904, %v906
        %v908 = vadd.f32 %v904, %v907
        %vm909 = vweird.f32 %v903
        %vm910 = vweird.f32 %v904
        %vm911 = vmor %vm909, %vm910
        %v912 = vsel %vm911, %v904, %v908
        %v913 = vand.u32 2147483647, %v903
        %vm914 = vcmp.eq.f32.partialorder %v913, 8.507059e+37
        %v915 = vand.u32 %v903, 2147483648
        %v916 = vor.u32 1.1754944e-38, %v915
        %v917 = vsel %vm914, %v916, %v912
        %v918 = vmul.f32 %v893, %v917
        %v919 = vmin.f32 %v918, 1.0
        %v920 = vmax.f32 %v919, -1.0
        %v921 = vadd.f32 %v880, 1.0
        %v922 = vadd.f32 %v920, 1.0
        %v923 = vmul.f32 %v837, %v921
        %v924 = vmul.f32 %v838, %v922
        %v925 = vld [vmem:[%s672] sm:$0xf]
        %v926 = vld [vmem:[%s672 + $0x4] sm:$0xf]
        %v927 = vld [vmem:[%s672 + $0x8] sm:$0xf]
        %v928 = vld [vmem:[%s672 + $0xc] sm:$0xf]
        %v929 = vpack.c.bf16 %v924, %v923
        %v930 = vld [vmem:[%s677] sm:$0xff]
        %v931 = vld [vmem:[%s677 + $0x8] sm:$0xff]
        %933 = vset.pattern.permute.xlu0 0
        %934 = vperm.xlu0 %933, %v930
        %v935 = vpop.permute.xlu0 %934
        %938 = vset.pattern.permute.xlu0 0
        %939 = vperm.xlu0 %938, %v931
        %v940 = vpop.permute.xlu0 %939
        %v946 = vunpack.c.l.b16 %v925
        %v947 = vunpack.c.l.b16 %v926
        %v948 = vunpack.c.l.b16 %v927
        %v949 = vunpack.c.l.b16 %v928
        %v950 = vpack.c.b16 %v947, %v946
        %v951 = vpack.c.b16 %v949, %v948
        %954 = vxpose.xlu0.c.b16.start [1/8] %v950, 128
        %955 = vxpose.xlu0.c.b16.cont [2/8] %v951, 128
        %956 = vxpose.xlu0.c.b16.cont [3/8] 0, 128
        %957 = vxpose.xlu0.c.b16.cont [4/8] 0, 128
        %958 = vxpose.xlu0.c.b16.cont [5/8] 0, 128
        %959 = vxpose.xlu0.c.b16.cont [6/8] 0, 128
        %960 = vxpose.xlu0.c.b16.cont [7/8] 0, 128
        %961 = vxpose.xlu0.c.b16.end [8/8] 0, 128
        %v962 = vpop.trf.xlu0
        %v963 = vpop.trf.xlu0
        %v964 = vpop.trf.xlu0
        %v965 = vpop.trf.xlu0
        %v966 = vpop.trf.xlu0
        %v967 = vpop.trf.xlu0
        %v968 = vpop.trf.xlu0
        %v969 = vpop.trf.xlu0
        %vm970 = vcmask 261120
        %v972 = vsel %vm970, %v962, 0
        %v975 = vsel %vm970, %v929, 0
        %977 = vmatpush.bf16.xpose.msra.mxu0 0
        %978 = vmatpush.bf16.xpose.msra.mxu0 0
        %979 = vmatpush.bf16.xpose.msra.mxu0 0
        %980 = vmatpush.bf16.xpose.msra.mxu0 0
        %981 = vmatpush.bf16.xpose.msra.mxu0 0
        %982 = vmatpush.bf16.xpose.msra.mxu0 0
        %983 = vmatpush.bf16.xpose.msra.mxu0 0
        %984 = vmatpush.bf16.xpose.msra.mxu0 %v975
        %985 = vmatmul.bf16.gmra.mxu0 %v972
        %v986 = vpop.f32.mrf.mxu0
        %v987 = vadd.f32 %v935, %v986
        %v988 = vpop.f32.mrf.mxu0
        %v989 = vadd.f32 %v940, %v988
        %990 = vdwg.mxu0
        %v991 = vadd.f32 %v725, %v987
        %v992 = vadd.f32 %v726, %v989
        %v993 = vld [vmem:[%s680] sm:$0x1]
        %v994 = vld [vmem:[%s683] sm:$0x1]
        %v995 = vsel %vm729, %v991, 0.0
        %996 = vadd.xlane.f32.xlu0 %v995
        %v997 = vpop.xlane.xlu0 %996
        %v998 = vsel %vm729, %v992, 0.0
        %999 = vadd.xlane.f32.xlu0 %v998
        %v1000 = vpop.xlane.xlu0 %999
        %v1001 = vmul.f32 %v997, %v742
        %v1002 = vmul.f32 %v1000, %v742
        %v1003 = vsub.f32 %v991, %v1001
        %v1004 = vsub.f32 %v992, %v1002
        %v1005 = vmul.f32 %v1003, %v1003
        %v1006 = vmul.f32 %v1004, %v1004
        %v1007 = vsel %vm729, %v1005, 0.0
        %1008 = vadd.xlane.f32.xlu0 %v1007
        %v1009 = vpop.xlane.xlu0 %1008
        %v1010 = vsel %vm729, %v1006, 0.0
        %1011 = vadd.xlane.f32.xlu0 %v1010
        %v1012 = vpop.xlane.xlu0 %1011
        %v1013 = vmul.f32 %v1009, %v742
        %v1014 = vmul.f32 %v1012, %v742
        %v1015 = vadd.f32 %v1013, 1e-05
        %v1016 = vadd.f32 %v1014, 1e-05
        %v1017 = vrsqrt.pop %v1015
        %v1018 = vmul.f32 %v1017, %v1015
        %v1019 = vmul.f32 %v1018, %v1017
        %v1020 = vmul.f32 0.5, %v1019
        %v1021 = vsub.f32 1.5, %v1020
        %v1022 = vmul.f32 %v1017, %v1021
        %vm1023 = vweird.f32 %v1015
        %vm1024 = vweird.f32 %v1017
        %vm1025 = vmor %vm1023, %vm1024
        %v1026 = vsel %vm1025, %v1017, %v1022
        %v1027 = vrsqrt.pop %v1016
        %v1028 = vmul.f32 %v1027, %v1016
        %v1029 = vmul.f32 %v1028, %v1027
        %v1030 = vmul.f32 0.5, %v1029
        %v1031 = vsub.f32 1.5, %v1030
        %v1032 = vmul.f32 %v1027, %v1031
        %vm1033 = vweird.f32 %v1016
        %vm1034 = vweird.f32 %v1027
        %vm1035 = vmor %vm1033, %vm1034
        %v1036 = vsel %vm1035, %v1027, %v1032
        %v1037 = vmul.f32 %v1003, %v1026
        %v1038 = vmul.f32 %v1004, %v1036
        %v1040 = vperm.slane %v993, 0
        %v1042 = vmul.f32 %v1037, %v1040
        %v1043 = vmul.f32 %v1038, %v1040
        %v1045 = vperm.slane %v994, 0
        %v1047 = vadd.f32 %v1042, %v1045
        %v1048 = vadd.f32 %v1043, %v1045
        %v1049 = vpack.c.bf16 %v1047, %v1047
        %v1050 = vpack.c.bf16 %v1048, %v1048
        %vm1051 = vcmask 125952
        %1052 = vst.msk [vmem:[#allocation2] sm:$0xf] %vm1051, %v1049
        %1053 = vst.msk [vmem:[#allocation2 + $0x4] sm:$0xf] %vm1051, %v1050
        %v1054 = vld [vmem:[%s710] sm:$0x1]
        %v1056 = vperm.slane %v1054, 0
        %v1058 = vadd.f32 %v991, %v1056
        %v1059 = vadd.f32 %v992, %v1056
        %1060 = vst.msk [vmem:[#allocation3] sm:$0xff] %vm729, %v1058
        %1061 = vst.msk [vmem:[#allocation3 + $0x8] sm:$0xff] %vm729, %v1059
      $region76: #{mixer_block.1} parent=71 // pred_fallthru
        _
      %v1062 = vld [vmem:[#allocation2] sm:$0xf]
      %v1063 = vld [vmem:[#allocation2 + $0x4] sm:$0xf]
      %v1064 = vld [vmem:[%s691] sm:$0xf]
      %v1065 = vld [vmem:[%s691 + $0x4] sm:$0xf]
      %v1066 = vld [vmem:[%s697] sm:$0x1]
      %v1068 = vperm.slane %v1066, 0
      %v1072 = vunpack.c.l.b16 %v1062
      %v1073 = vunpack.c.l.b16 %v1063
      %v1074 = vpack.c.b16 %v1073, %v1072
      %v1077 = vunpack.c.l.b16 %v1064
      %v1078 = vunpack.c.l.b16 %v1065
      %v1079 = vpack.c.b16 %v1078, %v1077
      %vm1081 = vcmask 130048
      %v1083 = vsel %vm1081, %v1074, 0
      %1085 = vmatpush.bf16.msra.mxu0 0
      %1086 = vmatpush.bf16.msra.mxu0 0
      %1087 = vmatpush.bf16.msra.mxu0 0
      %1088 = vmatpush.bf16.msra.mxu0 0
      %1089 = vmatpush.bf16.msra.mxu0 0
      %1090 = vmatpush.bf16.msra.mxu0 0
      %1091 = vmatpush.bf16.msra.mxu0 0
      %1092 = vmatpush.bf16.msra.mxu0 %v1079
      %1093 = vmatmul.bf16.gmra.mxu0 %v1083
      %v1094 = vpop.f32.mrf.mxu0
      %v1095 = vadd.f32 %v1068, %v1094
      %v1096 = vpop.f32.mrf.mxu0
      %v1097 = vadd.f32 %v1068, %v1096
      %1098 = vdwg.mxu0
      %v1099 = vmul.f32 %v1095, 0.5
      %v1100 = vmul.f32 %v1097, 0.5
      %v1101 = vmul.f32 %v1095, 0.70710677
      %v1102 = vmul.f32 %v1097, 0.70710677
      %v1103 = vmul.f32 %v1101, %v1101
      %v1104 = vmin.f32 16.0, %v1103
      %v1105 = vmul.f32 %v1104, 2.1237322e-06
      %v1106 = vadd.f32 %v1105, 0.00028619796
      %v1107 = vmul.f32 %v1104, %v1106
      %v1108 = vadd.f32 %v1107, 0.0036580483
      %v1109 = vmul.f32 %v1104, %v1108
      %v1110 = vadd.f32 %v1109, 0.05243302
      %v1111 = vmul.f32 %v1104, %v1110
      %v1112 = vadd.f32 %v1111, 0.18741608
      %v1113 = vmul.f32 %v1104, %v1112
      %v1114 = vadd.f32 %v1113, 1.1283791
      %v1115 = vmul.f32 %v1101, %v1114
      %v1116 = vmul.f32 %v1104, 3.8918573e-05
      %v1117 = vadd.f32 %v1116, 0.001143296
      %v1118 = vmul.f32 %v1104, %v1117
      %v1119 = vadd.f32 %v1118, 0.014752088
      %v1120 = vmul.f32 %v1104, %v1119
      %v1121 = vadd.f32 %v1120, 0.112945676
      %v1122 = vmul.f32 %v1104, %v1121
      %v1123 = vadd.f32 %v1122, 0.4994258
      %v1124 = vmul.f32 %v1104, %v1123
      %v1125 = vadd.f32 %v1124, 1.0
      %v1126 = vrcp.pop %v1125
      %v1127 = vmul.f32 %v1125, %v1126
      %v1128 = vsub.f32 1.0, %v1127
      %v1129 = vmul.f32 %v1126, %v1128
      %v1130 = vadd.f32 %v1126, %v1129
      %vm1131 = vweird.f32 %v1125
      %vm1132 = vweird.f32 %v1126
      %vm1133 = vmor %vm1131, %vm1132
      %v1134 = vsel %vm1133, %v1126, %v1130
      %v1135 = vand.u32 2147483647, %v1125
      %vm1136 = vcmp.eq.f32.partialorder %v1135, 8.507059e+37
      %v1137 = vand.u32 %v1125, 2147483648
      %v1138 = vor.u32 1.1754944e-38, %v1137
      %v1139 = vsel %vm1136, %v1138, %v1134
      %v1140 = vmul.f32 %v1115, %v1139
      %v1141 = vmin.f32 %v1140, 1.0
      %v1142 = vmax.f32 %v1141, -1.0
      %v1143 = vmul.f32 %v1102, %v1102
      %v1144 = vmin.f32 16.0, %v1143
      %v1145 = vmul.f32 %v1144, 2.1237322e-06
      %v1146 = vadd.f32 %v1145, 0.00028619796
      %v1147 = vmul.f32 %v1144, %v1146
      %v1148 = vadd.f32 %v1147, 0.0036580483
      %v1149 = vmul.f32 %v1144, %v1148
      %v1150 = vadd.f32 %v1149, 0.05243302
      %v1151 = vmul.f32 %v1144, %v1150
      %v1152 = vadd.f32 %v1151, 0.18741608
      %v1153 = vmul.f32 %v1144, %v1152
      %v1154 = vadd.f32 %v1153, 1.1283791
      %v1155 = vmul.f32 %v1102, %v1154
      %v1156 = vmul.f32 %v1144, 3.8918573e-05
      %v1157 = vadd.f32 %v1156, 0.001143296
      %v1158 = vmul.f32 %v1144, %v1157
      %v1159 = vadd.f32 %v1158, 0.014752088
      %v1160 = vmul.f32 %v1144, %v1159
      %v1161 = vadd.f32 %v1160, 0.112945676
      %v1162 = vmul.f32 %v1144, %v1161
      %v1163 = vadd.f32 %v1162, 0.4994258
      %v1164 = vmul.f32 %v1144, %v1163
      %v1165 = vadd.f32 %v1164, 1.0
      %v1166 = vrcp.pop %v1165
      %v1167 = vmul.f32 %v1165, %v1166
      %v1168 = vsub.f32 1.0, %v1167
      %v1169 = vmul.f32 %v1166, %v1168
      %v1170 = vadd.f32 %v1166, %v1169
      %vm1171 = vweird.f32 %v1165
      %vm1172 = vweird.f32 %v1166
      %vm1173 = vmor %vm1171, %vm1172
      %v1174 = vsel %vm1173, %v1166, %v1170
      %v1175 = vand.u32 2147483647, %v1165
      %vm1176 = vcmp.eq.f32.partialorder %v1175, 8.507059e+37
      %v1177 = vand.u32 %v1165, 2147483648
      %v1178 = vor.u32 1.1754944e-38, %v1177
      %v1179 = vsel %vm1176, %v1178, %v1174
      %v1180 = vmul.f32 %v1155, %v1179
      %v1181 = vmin.f32 %v1180, 1.0
      %v1182 = vmax.f32 %v1181, -1.0
      %v1183 = vadd.f32 %v1142, 1.0
      %v1184 = vadd.f32 %v1182, 1.0
      %v1185 = vmul.f32 %v1099, %v1183
      %v1186 = vmul.f32 %v1100, %v1184
      %v1187 = vld [vmem:[#allocation3] sm:$0xff]
      %v1188 = vld [vmem:[#allocation3 + $0x8] sm:$0xff]
      %v1189 = vld [vmem:[%s706] sm:$0xf]
      %v1190 = vld [vmem:[%s706 + $0x4] sm:$0xf]
      %v1191 = vld [vmem:[%s706 + $0x8] sm:$0xf]
      %v1192 = vld [vmem:[%s706 + $0xc] sm:$0xf]
      %v1193 = vpack.c.bf16 %v1186, %v1185
      %v1198 = vunpack.c.l.b16 %v1189
      %v1199 = vunpack.c.l.b16 %v1190
      %v1200 = vunpack.c.l.b16 %v1191
      %v1201 = vunpack.c.l.b16 %v1192
      %v1202 = vpack.c.b16 %v1199, %v1198
      %v1203 = vpack.c.b16 %v1201, %v1200
      %vm1206 = vcmask 261120
      %v1208 = vsel %vm1206, %v1193, 0
      %1210 = vmatpush.bf16.msra.mxu0 0
      %1211 = vmatpush.bf16.msra.mxu0 0
      %1212 = vmatpush.bf16.msra.mxu0 0
      %1213 = vmatpush.bf16.msra.mxu0 0
      %1214 = vmatpush.bf16.msra.mxu0 0
      %1215 = vmatpush.bf16.msra.mxu0 0
      %1216 = vmatpush.bf16.msra.mxu0 %v1203
      %1217 = vmatpush.bf16.msra.mxu0 %v1202
      %1218 = vmatmul.bf16.gmra.mxu0 %v1208
      %v1219 = vpop.f32.mrf.mxu0
      %v1220 = vadd.f32 0.0, %v1219
      %v1221 = vpop.f32.mrf.mxu0
      %v1222 = vadd.f32 0.0, %v1221
      %1223 = vdwg.mxu0
      %v1224 = vadd.f32 %v1187, %v1220
      %v1225 = vadd.f32 %v1188, %v1222
      %1226 = vst.msk [vmem:[#allocation3] sm:$0xff] %vm1081, %v1224
      %1227 = vst.msk [vmem:[#allocation3 + $0x8] sm:$0xff] %vm1081, %v1225
      // Predicated region
      $region77: #{mixer_block.1} parent=71 // pred_check
        %p1228 = pneg %p721
      $region78: #{mixer_block.1} parent=71 // pred_check_branch
        %1230 = sbr.rel (%p1228) target = $region80
      $region79: #{mixer_block.1} parent=71 // pred_region
        %v1231 = vld [vmem:[#allocation3] sm:$0xff]
        %v1232 = vld [vmem:[#allocation3 + $0x8] sm:$0xff]
        %1233 = vst.msk [vmem:[%s719] sm:$0xff] %vm1081, %v1231
        %1234 = vst.msk [vmem:[%s719 + $0x8] sm:$0xff] %vm1081, %v1232
      $region80: #{mixer_block.1} parent=71 // pred_fallthru
        _
      %p1235 = scmp.lt.s32.totalorder %s29, 1
      %s1236 = scalar_select %p1235, %s29, 1
      %p1237 = scmp.lt.s32.totalorder %s30, 1
      %s1238 = scalar_select %p1237, %s30, 1
      %s1239 = smul.addr %s1238, 2
      %s1240 = smul.addr %s1236, 4
      %s1241 = sadd.s32 %s1239, %s1240
      %s1242 = smul.addr %s1241, 8
      %s1243 = scalar_lea.vmem %s13, %s1242
      // Predicated region
      $region81: #{mixer_block.1} parent=71 // pred_check
        %p1244 = pneg %p409
      $region82: #{mixer_block.1} parent=71 // pred_check_branch
        %1246 = sbr.rel (%p1244) target = $region84
      $region83: #{mixer_block.1} parent=71 // pred_region
        _
      $region84: #{mixer_block.1} parent=71 // pred_fallthru
        _
    $region72: #{mixer_block.1} parent=5 // pred_fallthru
      _
    %p1247 = scmp.le.s32.totalorder 2, %s19
    // Predicated region
    $region85: #{mixer_block.1} parent=5 // pred_check
      %p1248 = pneg %p1247
    $region86: #{mixer_block.1} parent=5 // pred_check_branch
      %1250 = sbr.rel (%p1248) target = $region88
    $region87: #{mixer_block.1} parent=5 // pred_region
      %s1251 = ssub.s32 %s19, 2
      // Predicated region
      $region89: #{mixer_block.1} parent=87 // pred_check
        %p1252 = pneg %p415
      $region90: #{mixer_block.1} parent=87 // pred_check_branch
        %1254 = sbr.rel (%p1252) target = $region92
      $region91: #{mixer_block.1} parent=87 // pred_region
        %p1255 = scmp.lt.s32.totalorder %s32, 1
        %s1256 = scalar_select %p1255, %s32, 1
        %p1257 = scmp.lt.s32.totalorder %s33, 1
        %s1258 = scalar_select %p1257, %s33, 1
        %s1259 = smul.addr %s1258, 2
        %s1260 = smul.addr %s1256, 4
        %s1261 = sadd.s32 %s1259, %s1260
        %s1262 = smul.addr %s1261, 8
        %s1263 = scalar_lea.vmem %s13, %s1262
      $region92: #{mixer_block.1} parent=87 // pred_fallthru
        _
    $region88: #{mixer_block.1} parent=5 // pred_fallthru
      _
  $region6: #{mixer_block.1} parent=0 // loop_footer
    %s23 = sadd.s32 1, %s19
  $region7: #{mixer_block.1} parent=0 // loop_footer_branch
    %18 = sbr.rel target = $region3
  $region8: #{mixer_block.1} parent=0 // loop_exit
    _

</llo_original>
